<compile_context>
chip_gen: v6e
topology: v6e:2x2x1
jax: 0.10.0
libtpu: 0.0.40
codegen_flags: <defaults>
</compile_context>

<pallas_src>
import functools
import math

import jax
import jax.numpy as jnp
from jax import lax
from jax.experimental import pallas as pl
from jax.experimental.pallas import tpu as pltpu


def _layernorm_nobias(x, w, eps):
    # PyTorch nn.LayerNorm(dim, eps, bias=False): biased variance over last dim.
    mean = jnp.mean(x, axis=-1, keepdims=True)
    xc = x - mean
    var = jnp.mean(xc * xc, axis=-1, keepdims=True)
    return xc * lax.rsqrt(var + eps) * w


# --------------------- Kernel 1: KV projection + LN(k), head-major -----------
def kv_proj_kernel(cond_ref, wkv_ref, bkv_ref, lnk_ref, k_ref, v_ref, *,
                   n_head, n_hidden, eps):
    head_dim = n_hidden // n_head
    cond = cond_ref[...]                                            # (Tc, C) bf16
    kv = jnp.dot(cond, wkv_ref[...],
                 preferred_element_type=jnp.float32) + bkv_ref[0]   # (Tc, 2H) f32
    k = kv[:, :n_hidden]
    v = kv[:, n_hidden:]
    k = _layernorm_nobias(k, lnk_ref[0], eps)                       # f32 LN
    k = k.astype(k_ref.dtype)                                       # bf16
    v = v.astype(v_ref.dtype)
    # Head-major scatter: per-head lane slices are paid ONCE per batch element
    # here, so the attention kernel can index heads at the ref level for free.
    for h in range(n_head):
        lo = h * head_dim
        k_ref[h] = k[:, lo:lo + head_dim]
        v_ref[h] = v[:, lo:lo + head_dim]


# --------------------- Kernel 2: Q path + attention + output projection ------
def cross_attn_kernel(x_ref, k_ref, v_ref, wq_ref, bq_ref, lnq_ref,
                      wp_ref, bp_ref, o_ref, y_scr, *, n_head, eps):
    n_hidden = wq_ref.shape[1]
    head_dim = n_hidden // n_head
    scale = 1.0 / math.sqrt(head_dim)

    x = x_ref[...]                                                  # (TQ, C) bf16
    q = jnp.dot(x, wq_ref[...],
                preferred_element_type=jnp.float32) + bq_ref[0]     # (TQ, H) f32
    # Fold the attention scale into the LN weight (free; no per-score mul).
    q = _layernorm_nobias(q, lnq_ref[0] * scale, eps)               # f32 LN
    q = q.astype(jnp.bfloat16)                                      # MXU operand

    for h in range(n_head):
        lo = h * head_dim
        qh = q[:, lo:lo + head_dim]                                 # (TQ, hd) bf16
        kh = k_ref[h]                                               # (Tc, hd) bf16
        vh = v_ref[h]                                               # (Tc, hd) bf16
        # Transposed contraction: MXU consumes K directly, no XLU transpose.
        s = lax.dot_general(qh, kh, (((1,), (1,)), ((), ())),
                            preferred_element_type=jnp.float32)     # (TQ, Tc) f32
        m = jnp.max(s, axis=-1, keepdims=True)
        p = jnp.exp(s - m)
        denom = jnp.sum(p, axis=-1, keepdims=True)                  # (TQ, 1)
        yh = jnp.dot(p.astype(jnp.bfloat16), vh,
                     preferred_element_type=jnp.float32)            # (TQ, hd) f32
        # Deferred softmax normalization: scale the small (TQ, hd) output
        # instead of the (TQ, Tc) probability tile.
        yh = yh * pl.reciprocal(denom, approx=True)
        y_scr[:, lo:lo + head_dim] = yh.astype(y_scr.dtype)         # bf16 slab

    # Single full-width output projection (K = n_hidden fully loads the MXU),
    # replacing n_head narrow matmuls + n_head f32 accumulator read-mod-writes.
    out = jnp.dot(y_scr[...], wp_ref[...],
                  preferred_element_type=jnp.float32) + bp_ref[0]
    o_ref[...] = out.astype(o_ref.dtype)


# --------------------- Wrapper -----------------------------------------------
def _pick_query_tile(t, target=512):
    """Largest tile <= target that divides T (bigger tiles amortize per-step cost)."""
    if t <= target:
        return t
    for cand in (512, 256, 128, 64, 32, 16, 8):
        if cand <= target and t % cand == 0:
            return cand
    # TODO(synk): non-divisible T falls back to a single full-T tile; consider
    # padding T in the wrapper instead if such shapes show up in practice.
    return t


def _vmem_limit_bytes():
    # v7x: 64 MiB physical VMEM per core -> leave headroom; v5e/v6e: 128 MiB.
    try:
        cap = pltpu.get_tpu_info().vmem_capacity_bytes
    except Exception:
        cap = None
    if cap is not None and cap <= 64 * 1024 * 1024:
        return 36 * 1024 * 1024
    return 48 * 1024 * 1024


def _const_spec(shape, single_buffer):
    """BlockSpec for a grid-invariant (never re-DMA'd) operand."""
    nd = len(shape)
    if single_buffer:
        # Single-buffered: no wasted 2x VMEM for weights with constant index maps.
        return pl.BlockSpec(shape, lambda *_: (0,) * nd,
                            pipeline_mode=pl.Buffered(1))
    return pl.BlockSpec(shape, lambda *_: (0,) * nd)


def _forward(x_bf, cond_bf, wq, bq, wkv, bkv, lnq_w, lnk_w, wp, bp, *,
             n_head, eps, out_dtype, single_buffer):
    B, T, C = x_bf.shape
    _, Tc, _ = cond_bf.shape
    n_hidden = wq.shape[1]
    head_dim = n_hidden // n_head
    vmem_limit = _vmem_limit_bytes()

    # ---- Kernel 1: KV projection + LayerNorm(k), emitted head-major. --------
    kv_kernel = functools.partial(kv_proj_kernel, n_head=n_head,
                                  n_hidden=n_hidden, eps=eps)
    k_hm, v_hm = pl.pallas_call(
        kv_kernel,
        out_shape=(
            jax.ShapeDtypeStruct((B, n_head, Tc, head_dim), jnp.bfloat16),
            jax.ShapeDtypeStruct((B, n_head, Tc, head_dim), jnp.bfloat16),
        ),
        grid=(B,),
        in_specs=[
            pl.BlockSpec((None, Tc, C), lambda b: (b, 0, 0)),       # condition
            _const_spec(wkv.shape, single_buffer),                  # (C, 2H)
            _const_spec(bkv.shape, single_buffer),                  # (1, 2H)
            _const_spec(lnk_w.shape, single_buffer),                # (1, H)
        ],
        out_specs=(
            pl.BlockSpec((None, n_head, Tc, head_dim), lambda b: (b, 0, 0, 0)),
            pl.BlockSpec((None, n_head, Tc, head_dim), lambda b: (b, 0, 0, 0)),
        ),
        compiler_params=pltpu.CompilerParams(
            dimension_semantics=("parallel",),
            vmem_limit_bytes=vmem_limit,
        ),
    )(cond_bf, wkv, bkv, lnk_w)

    # ---- Kernel 2: Q path + attention + output projection. ------------------
    tq = _pick_query_tile(T)
    nq = max(T // tq, 1)
    attn_kernel = functools.partial(cross_attn_kernel, n_head=n_head, eps=eps)
    return pl.pallas_call(
        attn_kernel,
        out_shape=jax.ShapeDtypeStruct((B, T, C), out_dtype),
        grid=(B, nq),
        in_specs=[
            pl.BlockSpec((None, tq, C), lambda b, i: (b, i, 0)),              # x tile
            pl.BlockSpec((None, n_head, Tc, head_dim), lambda b, i: (b, 0, 0, 0)),  # K
            pl.BlockSpec((None, n_head, Tc, head_dim), lambda b, i: (b, 0, 0, 0)),  # V
            _const_spec(wq.shape, single_buffer),
            _const_spec(bq.shape, single_buffer),
            _const_spec(lnq_w.shape, single_buffer),
            _const_spec(wp.shape, single_buffer),
            _const_spec(bp.shape, single_buffer),
        ],
        out_specs=pl.BlockSpec((None, tq, C), lambda b, i: (b, i, 0)),
        scratch_shapes=[pltpu.VMEM((tq, n_hidden), jnp.bfloat16)],  # y_all slab
        compiler_params=pltpu.CompilerParams(
            # K/V hoisted -> no cross-iteration state -> both axes parallel,
            # so megacore (v7x) can split query tiles even at B == 1.
            dimension_semantics=("parallel", "parallel"),
            vmem_limit_bytes=vmem_limit,
        ),
    )(x_bf, k_hm, v_hm, wq, bq, lnq_w, wp, bp)


def cross_attention(x, condition, params, *, n_head, eps=1e-6):
    B, T, C = x.shape
    _, Tc, Cc = condition.shape
    assert C == Cc, "channels mismatch in cross attention"
    n_hidden = params["wq"].shape[1]
    assert n_hidden % n_head == 0, (
        f"n_hidden:{n_hidden} should be divisible among heads:{n_head}")

    out_dtype = x.dtype

    # bf16 MXU operands (halves HBM DMA + VMEM); biases/LN weights stay f32.
    # wkv/bkv are passed WHOLE (no materialized k/v weight copies in HBM).
    x_bf = x.astype(jnp.bfloat16)
    cond_bf = condition.astype(jnp.bfloat16)
    wq = params["wq"].astype(jnp.bfloat16)
    wkv = params["wkv"].astype(jnp.bfloat16)
    wp = params["wp"].astype(jnp.bfloat16)
    bq = params["bq"].astype(jnp.float32)
    bkv = params["bkv"].astype(jnp.float32)
    bp = params["bp"].astype(jnp.float32)
    lnq_w = params["lnq_w"].astype(jnp.float32)
    lnk_w = params["lnk_w"].astype(jnp.float32)

    args = (x_bf, cond_bf, wq, bq, wkv, bkv, lnq_w, lnk_w, wp, bp)
    kwargs = dict(n_head=n_head, eps=eps, out_dtype=out_dtype)
    single = hasattr(pl, "Buffered")
    try:
        return _forward(*args, single_buffer=single, **kwargs)
    except Exception:
        if not single:
            raise
        # Graceful fallback for JAX versions that reject single-buffered
        # (pipeline_mode=pl.Buffered(1)) BlockSpecs: rebuild double-buffered.
        return _forward(*args, single_buffer=False, **kwargs)


# --------------------- Pure-JAX reference & test harness ---------------------
def reference_cross_attention(x, condition, params, *, n_head, eps=1e-6):
    """Pure-JAX f32 reference mirroring the PyTorch forward."""
    B, T, C = x.shape
    _, Tc, _ = condition.shape
    H = params["wq"].shape[1]
    hd = H // n_head

    q = x @ params["wq"] + params["bq"][0]
    kv = condition @ params["wkv"] + params["bkv"][0]
    k, v = kv[..., :H], kv[..., H:]
    q = _layernorm_nobias(q, params["lnq_w"][0], eps)
    k = _layernorm_nobias(k, params["lnk_w"][0], eps)

    q = q.reshape(B, T, n_head, hd).transpose(0, 2, 1, 3)
    k = k.reshape(B, Tc, n_head, hd).transpose(0, 2, 1, 3)
    v = v.reshape(B, Tc, n_head, hd).transpose(0, 2, 1, 3)
    s = jnp.einsum("bhtd,bhsd->bhts", q, k) / math.sqrt(hd)
    p = jax.nn.softmax(s, axis=-1)
    y = jnp.einsum("bhts,bhsd->bhtd", p, v)
    y = y.transpose(0, 2, 1, 3).reshape(B, T, H)
    return y @ params["wp"] + params["bp"][0]


def init_params(key, n_embd, n_hidden):
    """Deterministic synthetic init (shapes match the PyTorch module)."""
    ks = jax.random.split(key, 6)
    std = 0.02
    return {
        # nn.Linear weights stored as (in, out) for y = x @ W + b
        "wq":  (jax.random.normal(ks[0], (n_embd, n_hidden)) * std).astype(jnp.float32),
        "bq":  (jax.random.normal(ks[1], (1, n_hidden)) * std).astype(jnp.float32),
        "wkv": (jax.random.normal(ks[2], (n_embd, 2 * n_hidden)) * std).astype(jnp.float32),
        "bkv": (jax.random.normal(ks[3], (1, 2 * n_hidden)) * std).astype(jnp.float32),
        "lnq_w": jnp.ones((1, n_hidden), jnp.float32),   # LayerNorm weight init = 1
        "lnk_w": jnp.ones((1, n_hidden), jnp.float32),
        "wp":  (jax.random.normal(ks[4], (n_hidden, n_embd)) * std).astype(jnp.float32),
        "bp":  (jax.random.normal(ks[5], (1, n_embd)) * std).astype(jnp.float32),
    }


if __name__ == "__main__":
    B, T, Tc = 2, 16, 8
    n_embd, n_head = 32, 4
    n_hidden = n_embd  # module default: n_hidden=None -> n_embd

    key = jax.random.PRNGKey(0)
    kx, kc, kp = jax.random.split(key, 3)
    x = jax.random.normal(kx, (B, T, n_embd), jnp.float32)
    condition = jax.random.normal(kc, (B, Tc, n_embd), jnp.float32)
    params = init_params(kp, n_embd, n_hidden)

    out = cross_attention(x, condition, params, n_head=n_head)
    out = jax.block_until_ready(out)

    ref = reference_cross_attention(x, condition, params, n_head=n_head)
    assert out.shape == (B, T, n_embd)
    # bf16 MXU operands + approx reciprocal vs f32 reference -> loose tolerance.
    # TODO(synk): gate approx reciprocal behind a flag if reused for training.
    assert jnp.allclose(out, ref, atol=5e-3, rtol=5e-2), (
        "mismatch vs reference, max abs err = "
        f"{float(jnp.max(jnp.abs(out - ref)))}")
    print("KERNEL_OK")
</pallas_src>

<mosaic_0001>
module attributes {stable_mosaic.version = 11 : i64} {
  func.func @kv_proj_kernel(%arg0: i32, %arg1: memref<1x8x32xbf16, #tpu.memory_space<vmem>>, %arg2: memref<32x64xbf16, #tpu.memory_space<vmem>>, %arg3: memref<1x64xf32, #tpu.memory_space<vmem>>, %arg4: memref<1x32xf32, #tpu.memory_space<vmem>>, %arg5: memref<1x4x8x8xbf16, #tpu.memory_space<vmem>>, %arg6: memref<1x4x8x8xbf16, #tpu.memory_space<vmem>>) attributes {dimension_semantics = [#tpu.dimension_semantics<parallel>], iteration_bounds = array<i64: 2>, scalar_prefetch = 0 : i64, scratch_operands = 0 : i64, tpu.core_type = #tpu.core_type<tc>, window_params = [{transform_indices = @transform_0, window_bounds = array<i64: 1, 8, 32>}, {pipeline_mode = #tpu.pipeline_mode<synchronous>, transform_indices = @transform_1, window_bounds = array<i64: 32, 64>}, {pipeline_mode = #tpu.pipeline_mode<synchronous>, transform_indices = @transform_2, window_bounds = array<i64: 1, 64>}, {pipeline_mode = #tpu.pipeline_mode<synchronous>, transform_indices = @transform_3, window_bounds = array<i64: 1, 32>}, {transform_indices = @transform_4, window_bounds = array<i64: 1, 4, 8, 8>}, {transform_indices = @transform_5, window_bounds = array<i64: 1, 4, 8, 8>}]} {
    %c0 = arith.constant 0 : index
    %c0_0 = arith.constant 0 : index
    %c0_1 = arith.constant 0 : index
    %0 = vector.load %arg1[%c0, %c0_0, %c0_1] : memref<1x8x32xbf16, #tpu.memory_space<vmem>>, vector<1x8x32xbf16>
    %1 = vector.shape_cast %0 : vector<1x8x32xbf16> to vector<8x32xbf16>
    %c0_2 = arith.constant 0 : index
    %c0_3 = arith.constant 0 : index
    %2 = vector.load %arg2[%c0_2, %c0_3] : memref<32x64xbf16, #tpu.memory_space<vmem>>, vector<32x64xbf16>
    %cst = arith.constant dense<0.000000e+00> : vector<8x64xf32>
    %3 = tpu.matmul %1, %2, %cst {dimension_numbers = #tpu.dot_dimension_numbers<[1], [0], [0], [1], [0, 0, 1, 1], [], []>} : vector<8x32xbf16>, vector<32x64xbf16>, vector<8x64xf32> -> vector<8x64xf32>
    %c0_4 = arith.constant 0 : index
    %c0_5 = arith.constant 0 : index
    %4 = vector.load %arg3[%c0_4, %c0_5] : memref<1x64xf32, #tpu.memory_space<vmem>>, vector<1x64xf32>
    %5 = vector.shape_cast %4 : vector<1x64xf32> to vector<64xf32>
    %6 = vector.shape_cast %5 : vector<64xf32> to vector<1x64xf32>
    %7 = vector.broadcast %6 : vector<1x64xf32> to vector<8x64xf32>
    %8 = arith.addf %3, %7 : vector<8x64xf32>
    %9 = vector.extract_strided_slice %8 {offsets = [0, 0], sizes = [8, 32], strides = [1, 1]} : vector<8x64xf32> to vector<8x32xf32>
    %10 = vector.extract_strided_slice %8 {offsets = [0, 32], sizes = [8, 32], strides = [1, 1]} : vector<8x64xf32> to vector<8x32xf32>
    %c0_6 = arith.constant 0 : index
    %c0_7 = arith.constant 0 : index
    %11 = vector.load %arg4[%c0_6, %c0_7] : memref<1x32xf32, #tpu.memory_space<vmem>>, vector<1x32xf32>
    %12 = vector.shape_cast %11 : vector<1x32xf32> to vector<32xf32>
    %cst_8 = arith.constant dense<0.000000e+00> : vector<8xf32>
    %13 = vector.multi_reduction <add>, %9, %cst_8 [1] : vector<8x32xf32> to vector<8xf32>
    %14 = vector.shape_cast %13 : vector<8xf32> to vector<8x1xf32>
    %cst_9 = arith.constant 3.200000e+01 : f32
    %15 = vector.broadcast %cst_9 : f32 to vector<8x1xf32>
    %16 = arith.divf %14, %15 : vector<8x1xf32>
    %17 = vector.broadcast %16 : vector<8x1xf32> to vector<8x32xf32>
    %18 = arith.subf %9, %17 : vector<8x32xf32>
    %19 = arith.mulf %18, %18 : vector<8x32xf32>
    %cst_10 = arith.constant dense<0.000000e+00> : vector<8xf32>
    %20 = vector.multi_reduction <add>, %19, %cst_10 [1] : vector<8x32xf32> to vector<8xf32>
    %21 = vector.shape_cast %20 : vector<8xf32> to vector<8x1xf32>
    %cst_11 = arith.constant 3.200000e+01 : f32
    %22 = vector.broadcast %cst_11 : f32 to vector<8x1xf32>
    %23 = arith.divf %21, %22 : vector<8x1xf32>
    %cst_12 = arith.constant 9.99999997E-7 : f32
    %24 = vector.broadcast %cst_12 : f32 to vector<8x1xf32>
    %25 = arith.addf %23, %24 : vector<8x1xf32>
    %26 = math.rsqrt %25 : vector<8x1xf32>
    %27 = vector.broadcast %26 : vector<8x1xf32> to vector<8x32xf32>
    %28 = arith.mulf %18, %27 : vector<8x32xf32>
    %29 = vector.shape_cast %12 : vector<32xf32> to vector<1x32xf32>
    %30 = vector.broadcast %29 : vector<1x32xf32> to vector<8x32xf32>
    %31 = arith.mulf %28, %30 : vector<8x32xf32>
    %32 = arith.truncf %31 : vector<8x32xf32> to vector<8x32xbf16>
    %33 = arith.truncf %10 : vector<8x32xf32> to vector<8x32xbf16>
    %34 = vector.extract_strided_slice %32 {offsets = [0, 0], sizes = [8, 8], strides = [1, 1]} : vector<8x32xbf16> to vector<8x8xbf16>
    %c0_13 = arith.constant 0 : index
    %c0_14 = arith.constant 0 : index
    %c0_15 = arith.constant 0 : index
    %c0_16 = arith.constant 0 : index
    %35 = vector.load %arg5[%c0_13, %c0_14, %c0_15, %c0_16] : memref<1x4x8x8xbf16, #tpu.memory_space<vmem>>, vector<1x1x8x8xbf16>
    %36 = vector.shape_cast %35 : vector<1x1x8x8xbf16> to vector<8x8xbf16>
    %37 = vector.shape_cast %34 : vector<8x8xbf16> to vector<1x1x8x8xbf16>
    tpu.vector_store %arg5[%c0_13, %c0_14, %c0_15, %c0_16], %37 {strides = array<i32>} : memref<1x4x8x8xbf16, #tpu.memory_space<vmem>>, vector<1x1x8x8xbf16>,
    %38 = vector.extract_strided_slice %33 {offsets = [0, 0], sizes = [8, 8], strides = [1, 1]} : vector<8x32xbf16> to vector<8x8xbf16>
    %c0_17 = arith.constant 0 : index
    %c0_18 = arith.constant 0 : index
    %c0_19 = arith.constant 0 : index
    %c0_20 = arith.constant 0 : index
    %39 = vector.load %arg6[%c0_17, %c0_18, %c0_19, %c0_20] : memref<1x4x8x8xbf16, #tpu.memory_space<vmem>>, vector<1x1x8x8xbf16>
    %40 = vector.shape_cast %39 : vector<1x1x8x8xbf16> to vector<8x8xbf16>
    %41 = vector.shape_cast %38 : vector<8x8xbf16> to vector<1x1x8x8xbf16>
    tpu.vector_store %arg6[%c0_17, %c0_18, %c0_19, %c0_20], %41 {strides = array<i32>} : memref<1x4x8x8xbf16, #tpu.memory_space<vmem>>, vector<1x1x8x8xbf16>,
    %42 = vector.extract_strided_slice %32 {offsets = [0, 8], sizes = [8, 8], strides = [1, 1]} : vector<8x32xbf16> to vector<8x8xbf16>
    %c0_21 = arith.constant 0 : index
    %c1 = arith.constant 1 : index
    %c0_22 = arith.constant 0 : index
    %c0_23 = arith.constant 0 : index
    %43 = vector.load %arg5[%c0_21, %c1, %c0_22, %c0_23] : memref<1x4x8x8xbf16, #tpu.memory_space<vmem>>, vector<1x1x8x8xbf16>
    %44 = vector.shape_cast %43 : vector<1x1x8x8xbf16> to vector<8x8xbf16>
    %45 = vector.shape_cast %42 : vector<8x8xbf16> to vector<1x1x8x8xbf16>
    tpu.vector_store %arg5[%c0_21, %c1, %c0_22, %c0_23], %45 {strides = array<i32>} : memref<1x4x8x8xbf16, #tpu.memory_space<vmem>>, vector<1x1x8x8xbf16>,
    %46 = vector.extract_strided_slice %33 {offsets = [0, 8], sizes = [8, 8], strides = [1, 1]} : vector<8x32xbf16> to vector<8x8xbf16>
    %c0_24 = arith.constant 0 : index
    %c1_25 = arith.constant 1 : index
    %c0_26 = arith.constant 0 : index
    %c0_27 = arith.constant 0 : index
    %47 = vector.load %arg6[%c0_24, %c1_25, %c0_26, %c0_27] : memref<1x4x8x8xbf16, #tpu.memory_space<vmem>>, vector<1x1x8x8xbf16>
    %48 = vector.shape_cast %47 : vector<1x1x8x8xbf16> to vector<8x8xbf16>
    %49 = vector.shape_cast %46 : vector<8x8xbf16> to vector<1x1x8x8xbf16>
    tpu.vector_store %arg6[%c0_24, %c1_25, %c0_26, %c0_27], %49 {strides = array<i32>} : memref<1x4x8x8xbf16, #tpu.memory_space<vmem>>, vector<1x1x8x8xbf16>,
    %50 = vector.extract_strided_slice %32 {offsets = [0, 16], sizes = [8, 8], strides = [1, 1]} : vector<8x32xbf16> to vector<8x8xbf16>
    %c0_28 = arith.constant 0 : index
    %c2 = arith.constant 2 : index
    %c0_29 = arith.constant 0 : index
    %c0_30 = arith.constant 0 : index
    %51 = vector.load %arg5[%c0_28, %c2, %c0_29, %c0_30] : memref<1x4x8x8xbf16, #tpu.memory_space<vmem>>, vector<1x1x8x8xbf16>
    %52 = vector.shape_cast %51 : vector<1x1x8x8xbf16> to vector<8x8xbf16>
    %53 = vector.shape_cast %50 : vector<8x8xbf16> to vector<1x1x8x8xbf16>
    tpu.vector_store %arg5[%c0_28, %c2, %c0_29, %c0_30], %53 {strides = array<i32>} : memref<1x4x8x8xbf16, #tpu.memory_space<vmem>>, vector<1x1x8x8xbf16>,
    %54 = vector.extract_strided_slice %33 {offsets = [0, 16], sizes = [8, 8], strides = [1, 1]} : vector<8x32xbf16> to vector<8x8xbf16>
    %c0_31 = arith.constant 0 : index
    %c2_32 = arith.constant 2 : index
    %c0_33 = arith.constant 0 : index
    %c0_34 = arith.constant 0 : index
    %55 = vector.load %arg6[%c0_31, %c2_32, %c0_33, %c0_34] : memref<1x4x8x8xbf16, #tpu.memory_space<vmem>>, vector<1x1x8x8xbf16>
    %56 = vector.shape_cast %55 : vector<1x1x8x8xbf16> to vector<8x8xbf16>
    %57 = vector.shape_cast %54 : vector<8x8xbf16> to vector<1x1x8x8xbf16>
    tpu.vector_store %arg6[%c0_31, %c2_32, %c0_33, %c0_34], %57 {strides = array<i32>} : memref<1x4x8x8xbf16, #tpu.memory_space<vmem>>, vector<1x1x8x8xbf16>,
    %58 = vector.extract_strided_slice %32 {offsets = [0, 24], sizes = [8, 8], strides = [1, 1]} : vector<8x32xbf16> to vector<8x8xbf16>
    %c0_35 = arith.constant 0 : index
    %c3 = arith.constant 3 : index
    %c0_36 = arith.constant 0 : index
    %c0_37 = arith.constant 0 : index
    %59 = vector.load %arg5[%c0_35, %c3, %c0_36, %c0_37] : memref<1x4x8x8xbf16, #tpu.memory_space<vmem>>, vector<1x1x8x8xbf16>
    %60 = vector.shape_cast %59 : vector<1x1x8x8xbf16> to vector<8x8xbf16>
    %61 = vector.shape_cast %58 : vector<8x8xbf16> to vector<1x1x8x8xbf16>
    tpu.vector_store %arg5[%c0_35, %c3, %c0_36, %c0_37], %61 {strides = array<i32>} : memref<1x4x8x8xbf16, #tpu.memory_space<vmem>>, vector<1x1x8x8xbf16>,
    %62 = vector.extract_strided_slice %33 {offsets = [0, 24], sizes = [8, 8], strides = [1, 1]} : vector<8x32xbf16> to vector<8x8xbf16>
    %c0_38 = arith.constant 0 : index
    %c3_39 = arith.constant 3 : index
    %c0_40 = arith.constant 0 : index
    %c0_41 = arith.constant 0 : index
    %63 = vector.load %arg6[%c0_38, %c3_39, %c0_40, %c0_41] : memref<1x4x8x8xbf16, #tpu.memory_space<vmem>>, vector<1x1x8x8xbf16>
    %64 = vector.shape_cast %63 : vector<1x1x8x8xbf16> to vector<8x8xbf16>
    %65 = vector.shape_cast %62 : vector<8x8xbf16> to vector<1x1x8x8xbf16>
    tpu.vector_store %arg6[%c0_38, %c3_39, %c0_40, %c0_41], %65 {strides = array<i32>} : memref<1x4x8x8xbf16, #tpu.memory_space<vmem>>, vector<1x1x8x8xbf16>,
    return
  }
  func.func @transform_0(%arg0: i32) -> (i32, i32, i32) {
    %c0_i32 = arith.constant 0 : i32
    %c0_i32_0 = arith.constant 0 : i32
    %c0_i32_1 = arith.constant 0 : i32
    return %arg0, %c0_i32, %c0_i32_0 : i32, i32, i32
  }
  func.func @transform_1(%arg0: i32) -> (i32, i32) {
    %c0_i32 = arith.constant 0 : i32
    %c0_i32_0 = arith.constant 0 : i32
    %c0_i32_1 = arith.constant 0 : i32
    return %c0_i32, %c0_i32_0 : i32, i32
  }
  func.func @transform_2(%arg0: i32) -> (i32, i32) {
    %c0_i32 = arith.constant 0 : i32
    %c0_i32_0 = arith.constant 0 : i32
    %c0_i32_1 = arith.constant 0 : i32
    return %c0_i32, %c0_i32_0 : i32, i32
  }
  func.func @transform_3(%arg0: i32) -> (i32, i32) {
    %c0_i32 = arith.constant 0 : i32
    %c0_i32_0 = arith.constant 0 : i32
    %c0_i32_1 = arith.constant 0 : i32
    return %c0_i32, %c0_i32_0 : i32, i32
  }
  func.func @transform_4(%arg0: i32) -> (i32, i32, i32, i32) {
    %c0_i32 = arith.constant 0 : i32
    %c0_i32_0 = arith.constant 0 : i32
    %c0_i32_1 = arith.constant 0 : i32
    %c0_i32_2 = arith.constant 0 : i32
    return %arg0, %c0_i32, %c0_i32_0, %c0_i32_1 : i32, i32, i32, i32
  }
  func.func @transform_5(%arg0: i32) -> (i32, i32, i32, i32) {
    %c0_i32 = arith.constant 0 : i32
    %c0_i32_0 = arith.constant 0 : i32
    %c0_i32_1 = arith.constant 0 : i32
    %c0_i32_2 = arith.constant 0 : i32
    return %arg0, %c0_i32, %c0_i32_0, %c0_i32_1 : i32, i32, i32, i32
  }
}

module attributes {stable_mosaic.version = 11 : i64} {
  func.func @kv_proj_kernel(%arg0: i32, %arg1: memref<1x8x32xbf16, #tpu.memory_space<vmem>>, %arg2: memref<32x64xbf16, #tpu.memory_space<vmem>>, %arg3: memref<1x64xf32, #tpu.memory_space<vmem>>, %arg4: memref<1x32xf32, #tpu.memory_space<vmem>>, %arg5: memref<1x4x8x8xbf16, #tpu.memory_space<vmem>>, %arg6: memref<1x4x8x8xbf16, #tpu.memory_space<vmem>>) attributes {dimension_semantics = [#tpu.dimension_semantics<parallel>], iteration_bounds = array<i64: 2>, scalar_prefetch = 0 : i64, scratch_operands = 0 : i64, tpu.core_type = #tpu.core_type<tc>, window_params = [{transform_indices = @transform_0, window_bounds = array<i64: 1, 8, 32>}, {pipeline_mode = #tpu.pipeline_mode<synchronous>, transform_indices = @transform_1, window_bounds = array<i64: 32, 64>}, {pipeline_mode = #tpu.pipeline_mode<synchronous>, transform_indices = @transform_2, window_bounds = array<i64: 1, 64>}, {pipeline_mode = #tpu.pipeline_mode<synchronous>, transform_indices = @transform_3, window_bounds = array<i64: 1, 32>}, {transform_indices = @transform_4, window_bounds = array<i64: 1, 4, 8, 8>}, {transform_indices = @transform_5, window_bounds = array<i64: 1, 4, 8, 8>}]} {
    %c0 = arith.constant 0 : index
    %c0_0 = arith.constant 0 : index
    %c0_1 = arith.constant 0 : index
    %0 = vector.load %arg1[%c0, %c0_0, %c0_1] : memref<1x8x32xbf16, #tpu.memory_space<vmem>>, vector<1x8x32xbf16>
    %1 = vector.shape_cast %0 : vector<1x8x32xbf16> to vector<8x32xbf16>
    %c0_2 = arith.constant 0 : index
    %c0_3 = arith.constant 0 : index
    %2 = vector.load %arg2[%c0_2, %c0_3] : memref<32x64xbf16, #tpu.memory_space<vmem>>, vector<32x64xbf16>
    %cst = arith.constant dense<0.000000e+00> : vector<8x64xf32>
    %3 = tpu.matmul %1, %2, %cst {dimension_numbers = #tpu.dot_dimension_numbers<[1], [0], [0], [1], [0, 0, 1, 1], [], []>} : vector<8x32xbf16>, vector<32x64xbf16>, vector<8x64xf32> -> vector<8x64xf32>
    %c0_4 = arith.constant 0 : index
    %c0_5 = arith.constant 0 : index
    %4 = vector.load %arg3[%c0_4, %c0_5] : memref<1x64xf32, #tpu.memory_space<vmem>>, vector<1x64xf32>
    %5 = vector.shape_cast %4 : vector<1x64xf32> to vector<64xf32>
    %6 = vector.shape_cast %5 : vector<64xf32> to vector<1x64xf32>
    %7 = vector.broadcast %6 : vector<1x64xf32> to vector<8x64xf32>
    %8 = arith.addf %3, %7 : vector<8x64xf32>
    %9 = vector.extract_strided_slice %8 {offsets = [0, 0], sizes = [8, 32], strides = [1, 1]} : vector<8x64xf32> to vector<8x32xf32>
    %10 = vector.extract_strided_slice %8 {offsets = [0, 32], sizes = [8, 32], strides = [1, 1]} : vector<8x64xf32> to vector<8x32xf32>
    %c0_6 = arith.constant 0 : index
    %c0_7 = arith.constant 0 : index
    %11 = vector.load %arg4[%c0_6, %c0_7] : memref<1x32xf32, #tpu.memory_space<vmem>>, vector<1x32xf32>
    %12 = vector.shape_cast %11 : vector<1x32xf32> to vector<32xf32>
    %cst_8 = arith.constant dense<0.000000e+00> : vector<8xf32>
    %13 = vector.multi_reduction <add>, %9, %cst_8 [1] : vector<8x32xf32> to vector<8xf32>
    %14 = vector.shape_cast %13 : vector<8xf32> to vector<8x1xf32>
    %cst_9 = arith.constant 3.200000e+01 : f32
    %15 = vector.broadcast %cst_9 : f32 to vector<8x1xf32>
    %16 = arith.divf %14, %15 : vector<8x1xf32>
    %17 = vector.broadcast %16 : vector<8x1xf32> to vector<8x32xf32>
    %18 = arith.subf %9, %17 : vector<8x32xf32>
    %19 = arith.mulf %18, %18 : vector<8x32xf32>
    %cst_10 = arith.constant dense<0.000000e+00> : vector<8xf32>
    %20 = vector.multi_reduction <add>, %19, %cst_10 [1] : vector<8x32xf32> to vector<8xf32>
    %21 = vector.shape_cast %20 : vector<8xf32> to vector<8x1xf32>
    %cst_11 = arith.constant 3.200000e+01 : f32
    %22 = vector.broadcast %cst_11 : f32 to vector<8x1xf32>
    %23 = arith.divf %21, %22 : vector<8x1xf32>
    %cst_12 = arith.constant 9.99999997E-7 : f32
    %24 = vector.broadcast %cst_12 : f32 to vector<8x1xf32>
    %25 = arith.addf %23, %24 : vector<8x1xf32>
    %26 = math.rsqrt %25 : vector<8x1xf32>
    %27 = vector.broadcast %26 : vector<8x1xf32> to vector<8x32xf32>
    %28 = arith.mulf %18, %27 : vector<8x32xf32>
    %29 = vector.shape_cast %12 : vector<32xf32> to vector<1x32xf32>
    %30 = vector.broadcast %29 : vector<1x32xf32> to vector<8x32xf32>
    %31 = arith.mulf %28, %30 : vector<8x32xf32>
    %32 = arith.truncf %31 : vector<8x32xf32> to vector<8x32xbf16>
    %33 = arith.truncf %10 : vector<8x32xf32> to vector<8x32xbf16>
    %34 = vector.extract_strided_slice %32 {offsets = [0, 0], sizes = [8, 8], strides = [1, 1]} : vector<8x32xbf16> to vector<8x8xbf16>
    %c0_13 = arith.constant 0 : index
    %c0_14 = arith.constant 0 : index
    %c0_15 = arith.constant 0 : index
    %c0_16 = arith.constant 0 : index
    %35 = vector.load %arg5[%c0_13, %c0_14, %c0_15, %c0_16] : memref<1x4x8x8xbf16, #tpu.memory_space<vmem>>, vector<1x1x8x8xbf16>
    %36 = vector.shape_cast %35 : vector<1x1x8x8xbf16> to vector<8x8xbf16>
    %37 = vector.shape_cast %34 : vector<8x8xbf16> to vector<1x1x8x8xbf16>
    tpu.vector_store %arg5[%c0_13, %c0_14, %c0_15, %c0_16], %37 {strides = array<i32>} : memref<1x4x8x8xbf16, #tpu.memory_space<vmem>>, vector<1x1x8x8xbf16>,
    %38 = vector.extract_strided_slice %33 {offsets = [0, 0], sizes = [8, 8], strides = [1, 1]} : vector<8x32xbf16> to vector<8x8xbf16>
    %c0_17 = arith.constant 0 : index
    %c0_18 = arith.constant 0 : index
    %c0_19 = arith.constant 0 : index
    %c0_20 = arith.constant 0 : index
    %39 = vector.load %arg6[%c0_17, %c0_18, %c0_19, %c0_20] : memref<1x4x8x8xbf16, #tpu.memory_space<vmem>>, vector<1x1x8x8xbf16>
    %40 = vector.shape_cast %39 : vector<1x1x8x8xbf16> to vector<8x8xbf16>
    %41 = vector.shape_cast %38 : vector<8x8xbf16> to vector<1x1x8x8xbf16>
    tpu.vector_store %arg6[%c0_17, %c0_18, %c0_19, %c0_20], %41 {strides = array<i32>} : memref<1x4x8x8xbf16, #tpu.memory_space<vmem>>, vector<1x1x8x8xbf16>,
    %42 = vector.extract_strided_slice %32 {offsets = [0, 8], sizes = [8, 8], strides = [1, 1]} : vector<8x32xbf16> to vector<8x8xbf16>
    %c0_21 = arith.constant 0 : index
    %c1 = arith.constant 1 : index
    %c0_22 = arith.constant 0 : index
    %c0_23 = arith.constant 0 : index
    %43 = vector.load %arg5[%c0_21, %c1, %c0_22, %c0_23] : memref<1x4x8x8xbf16, #tpu.memory_space<vmem>>, vector<1x1x8x8xbf16>
    %44 = vector.shape_cast %43 : vector<1x1x8x8xbf16> to vector<8x8xbf16>
    %45 = vector.shape_cast %42 : vector<8x8xbf16> to vector<1x1x8x8xbf16>
    tpu.vector_store %arg5[%c0_21, %c1, %c0_22, %c0_23], %45 {strides = array<i32>} : memref<1x4x8x8xbf16, #tpu.memory_space<vmem>>, vector<1x1x8x8xbf16>,
    %46 = vector.extract_strided_slice %33 {offsets = [0, 8], sizes = [8, 8], strides = [1, 1]} : vector<8x32xbf16> to vector<8x8xbf16>
    %c0_24 = arith.constant 0 : index
    %c1_25 = arith.constant 1 : index
    %c0_26 = arith.constant 0 : index
    %c0_27 = arith.constant 0 : index
    %47 = vector.load %arg6[%c0_24, %c1_25, %c0_26, %c0_27] : memref<1x4x8x8xbf16, #tpu.memory_space<vmem>>, vector<1x1x8x8xbf16>
    %48 = vector.shape_cast %47 : vector<1x1x8x8xbf16> to vector<8x8xbf16>
    %49 = vector.shape_cast %46 : vector<8x8xbf16> to vector<1x1x8x8xbf16>
    tpu.vector_store %arg6[%c0_24, %c1_25, %c0_26, %c0_27], %49 {strides = array<i32>} : memref<1x4x8x8xbf16, #tpu.memory_space<vmem>>, vector<1x1x8x8xbf16>,
    %50 = vector.extract_strided_slice %32 {offsets = [0, 16], sizes = [8, 8], strides = [1, 1]} : vector<8x32xbf16> to vector<8x8xbf16>
    %c0_28 = arith.constant 0 : index
    %c2 = arith.constant 2 : index
    %c0_29 = arith.constant 0 : index
    %c0_30 = arith.constant 0 : index
    %51 = vector.load %arg5[%c0_28, %c2, %c0_29, %c0_30] : memref<1x4x8x8xbf16, #tpu.memory_space<vmem>>, vector<1x1x8x8xbf16>
    %52 = vector.shape_cast %51 : vector<1x1x8x8xbf16> to vector<8x8xbf16>
    %53 = vector.shape_cast %50 : vector<8x8xbf16> to vector<1x1x8x8xbf16>
    tpu.vector_store %arg5[%c0_28, %c2, %c0_29, %c0_30], %53 {strides = array<i32>} : memref<1x4x8x8xbf16, #tpu.memory_space<vmem>>, vector<1x1x8x8xbf16>,
    %54 = vector.extract_strided_slice %33 {offsets = [0, 16], sizes = [8, 8], strides = [1, 1]} : vector<8x32xbf16> to vector<8x8xbf16>
    %c0_31 = arith.constant 0 : index
    %c2_32 = arith.constant 2 : index
    %c0_33 = arith.constant 0 : index
    %c0_34 = arith.constant 0 : index
    %55 = vector.load %arg6[%c0_31, %c2_32, %c0_33, %c0_34] : memref<1x4x8x8xbf16, #tpu.memory_space<vmem>>, vector<1x1x8x8xbf16>
    %56 = vector.shape_cast %55 : vector<1x1x8x8xbf16> to vector<8x8xbf16>
    %57 = vector.shape_cast %54 : vector<8x8xbf16> to vector<1x1x8x8xbf16>
    tpu.vector_store %arg6[%c0_31, %c2_32, %c0_33, %c0_34], %57 {strides = array<i32>} : memref<1x4x8x8xbf16, #tpu.memory_space<vmem>>, vector<1x1x8x8xbf16>,
    %58 = vector.extract_strided_slice %32 {offsets = [0, 24], sizes = [8, 8], strides = [1, 1]} : vector<8x32xbf16> to vector<8x8xbf16>
    %c0_35 = arith.constant 0 : index
    %c3 = arith.constant 3 : index
    %c0_36 = arith.constant 0 : index
    %c0_37 = arith.constant 0 : index
    %59 = vector.load %arg5[%c0_35, %c3, %c0_36, %c0_37] : memref<1x4x8x8xbf16, #tpu.memory_space<vmem>>, vector<1x1x8x8xbf16>
    %60 = vector.shape_cast %59 : vector<1x1x8x8xbf16> to vector<8x8xbf16>
    %61 = vector.shape_cast %58 : vector<8x8xbf16> to vector<1x1x8x8xbf16>
    tpu.vector_store %arg5[%c0_35, %c3, %c0_36, %c0_37], %61 {strides = array<i32>} : memref<1x4x8x8xbf16, #tpu.memory_space<vmem>>, vector<1x1x8x8xbf16>,
    %62 = vector.extract_strided_slice %33 {offsets = [0, 24], sizes = [8, 8], strides = [1, 1]} : vector<8x32xbf16> to vector<8x8xbf16>
    %c0_38 = arith.constant 0 : index
    %c3_39 = arith.constant 3 : index
    %c0_40 = arith.constant 0 : index
    %c0_41 = arith.constant 0 : index
    %63 = vector.load %arg6[%c0_38, %c3_39, %c0_40, %c0_41] : memref<1x4x8x8xbf16, #tpu.memory_space<vmem>>, vector<1x1x8x8xbf16>
    %64 = vector.shape_cast %63 : vector<1x1x8x8xbf16> to vector<8x8xbf16>
    %65 = vector.shape_cast %62 : vector<8x8xbf16> to vector<1x1x8x8xbf16>
    tpu.vector_store %arg6[%c0_38, %c3_39, %c0_40, %c0_41], %65 {strides = array<i32>} : memref<1x4x8x8xbf16, #tpu.memory_space<vmem>>, vector<1x1x8x8xbf16>,
    return
  }
  func.func @transform_0(%arg0: i32) -> (i32, i32, i32) {
    %c0_i32 = arith.constant 0 : i32
    %c0_i32_0 = arith.constant 0 : i32
    %c0_i32_1 = arith.constant 0 : i32
    return %arg0, %c0_i32, %c0_i32_0 : i32, i32, i32
  }
  func.func @transform_1(%arg0: i32) -> (i32, i32) {
    %c0_i32 = arith.constant 0 : i32
    %c0_i32_0 = arith.constant 0 : i32
    %c0_i32_1 = arith.constant 0 : i32
    return %c0_i32, %c0_i32_0 : i32, i32
  }
  func.func @transform_2(%arg0: i32) -> (i32, i32) {
    %c0_i32 = arith.constant 0 : i32
    %c0_i32_0 = arith.constant 0 : i32
    %c0_i32_1 = arith.constant 0 : i32
    return %c0_i32, %c0_i32_0 : i32, i32
  }
  func.func @transform_3(%arg0: i32) -> (i32, i32) {
    %c0_i32 = arith.constant 0 : i32
    %c0_i32_0 = arith.constant 0 : i32
    %c0_i32_1 = arith.constant 0 : i32
    return %c0_i32, %c0_i32_0 : i32, i32
  }
  func.func @transform_4(%arg0: i32) -> (i32, i32, i32, i32) {
    %c0_i32 = arith.constant 0 : i32
    %c0_i32_0 = arith.constant 0 : i32
    %c0_i32_1 = arith.constant 0 : i32
    %c0_i32_2 = arith.constant 0 : i32
    return %arg0, %c0_i32, %c0_i32_0, %c0_i32_1 : i32, i32, i32, i32
  }
  func.func @transform_5(%arg0: i32) -> (i32, i32, i32, i32) {
    %c0_i32 = arith.constant 0 : i32
    %c0_i32_0 = arith.constant 0 : i32
    %c0_i32_1 = arith.constant 0 : i32
    %c0_i32_2 = arith.constant 0 : i32
    return %arg0, %c0_i32, %c0_i32_0, %c0_i32_1 : i32, i32, i32, i32
  }
}

</mosaic_0001>

<llo_original>
// kernel: tpu_custom_call.1
$region0: #{tpu_custom_call.1}
  #allocation0 [shape = 'u32[]', space=smem, size = 0x4, offset = 0x4, fixed_abs, tag = 'smem constant byte address 0x4 - core index']
  #allocation1 [shape = 'u32[144,128]{1,0:T(1,128)}', space=vmem, size = 0x12000, scoped, tag = 'internal scratch']
  %s0 = inlined_call_operand.hbm [shape: bf16[2,8,32], index: 0, kind: input, shape index: {}]
  %s1 = inlined_call_operand.hbm [shape: bf16[32,64], index: 1, kind: input, shape index: {}]
  %s2 = inlined_call_operand.vmem [shape: f32[1,64], index: 2, kind: input, shape index: {}]
  %s3 = inlined_call_operand.vmem [shape: f32[1,32], index: 3, kind: input, shape index: {}]
  %s4 = inlined_call_operand.hbm [shape: bf16[2,4,8,8], index: 4, kind: output, shape index: {0}]
  %s5 = inlined_call_operand.hbm [shape: bf16[2,4,8,8], index: 5, kind: output, shape index: {1}]
  %6 = xla_tuple %s4, %s5
  %s7 = sld [smem:[#allocation0]]
  $region65: #{tpu_custom_call.1} parent=0
    _
  %s9 = ssub.s32 1, %s7
  %s10 = scalar_select 0, %s9, %s7
  $region1: #{tpu_custom_call.1} parent=0
    #allocation2 [shape = 'u8[4096]{0}', space=vmem, size = 0x1000, scoped, tag = 'input window, operand 0']
    #allocation3 [shape = 's32[2]{0}', space=sflag, size = 0x8, scoped, tag = 'scoped memory for tpu_custom_call.1']
    #allocation4 [shape = 's32[2]{0}', space=sflag, size = 0x8, scoped, tag = 'scoped memory for tpu_custom_call.1']
    #allocation5 [shape = 'u8[8192]{0}', space=vmem, size = 0x2000, scoped, tag = 'input window, operand 1, single buffered']
    #allocation6 [shape = 's32[1]{0}', space=sflag, size = 0x4, scoped, tag = 'scoped memory for tpu_custom_call.1']
    #allocation7 [shape = 'u8[16384]{0}', space=vmem, size = 0x4000, scoped, tag = 'output window, operand 0']
    #allocation8 [shape = 'u8[16384]{0}', space=vmem, size = 0x4000, scoped, tag = 'output window, operand 1']
    #allocation9 [shape = 's32[2]{0}', space=sflag, size = 0x8, scoped, tag = 'scoped memory for tpu_custom_call.1']
    %11 = vsyncpa [#allocation3], 0
    %s12 = scalar_lea.sflag [#allocation3], 1
    %13 = vsyncpa %s12, 0
    %14 = vsyncpa [#allocation6], 0
    %15 = vsyncpa [#allocation4], 0
    %s16 = scalar_lea.sflag [#allocation4], 1
    %17 = vsyncpa %s16, 0
    %18 = vsyncpa [#allocation9], 0
    %s19 = scalar_lea.sflag [#allocation9], 1
    %20 = vsyncpa %s19, 0
    loop: start=0, step=1, limit=4
    $region2: #{tpu_custom_call.1} parent=1 // loop_pre_header
      _
    $region3: #{tpu_custom_call.1} parent=1 // loop_header
      %s22 = sphi 0, %s26
      %p23 = scmp.ge.s32.totalorder %s22, 4
      %s32 = sphi 0, %s34
      %s35 = sphi 0, %s32
      %s36 = sphi 0, %s35
      %s52 = sphi 0, %s36
      %s56 = sphi 0, %s56
      %s58 = sphi 0, %s56
      %s59 = sphi 0, %s58
      %s73 = sphi 0, %s59
      %s77 = sphi 0, %s77
      %s79 = sphi 0, %s77
      %s80 = sphi 0, %s79
      %s94 = sphi 0, %s80
      %s98 = sphi 0, %s98
      %s100 = sphi 0, %s98
      %s101 = sphi 0, %s100
      %s115 = sphi 0, %s101
      %s121 = sphi 0, %s123
      %s124 = sphi 0, %s121
      %s125 = sphi 0, %s124
      %s141 = sphi 0, %s125
      %s147 = sphi 0, %s149
      %s150 = sphi 0, %s147
      %s151 = sphi 0, %s150
      %s167 = sphi 0, %s151
    $region4: #{tpu_custom_call.1} parent=1 // loop_header_branch
      %25 = sbr.rel (%p23) target = $region8
    $region5: #{tpu_custom_call.1} parent=1 // loop_body
      %s27 = ssub.s32 %s22, 1
      %s28 = ssub.s32 %s22, 2
      %s29 = sadd.s32 %s22, 1
      %s30 = ssub.s32 %s22, %s29
      %p31 = scmp.eq.s32.totalorder %s30, 0
      %s33 = sadd.s32 %s32, 1
      %s34 = scalar_select %p31, %s32, %s33
      %p37 = pneg %p31
      %p38 = scmp.eq.s32.totalorder %s22, 1
      %p39 = por %p37, %p38
      %p40 = scmp.ne.s32.totalorder %s32, %s35
      %p41 = scmp.eq.s32.totalorder %s22, 0
      %p42 = por %p40, %p41
      %p43 = scmp.ne.s32.totalorder %s32, %s35
      %p44 = scmp.eq.s32.totalorder %s27, 1
      %p45 = por %p43, %p44
      %p46 = scmp.ne.s32.totalorder %s35, %s36
      %p47 = scmp.eq.s32.totalorder %s27, 0
      %p48 = por %p46, %p47
      %p49 = scmp.ne.s32.totalorder %s35, %s36
      %p50 = scmp.eq.s32.totalorder %s28, 1
      %p51 = por %p49, %p50
      %p53 = scmp.ne.s32.totalorder %s36, %s52
      %p54 = scmp.eq.s32.totalorder %s28, 0
      %p55 = por %p53, %p54
      %s57 = sadd.s32 %s56, 1
      %p60 = scmp.eq.s32.totalorder %s22, 1
      %p61 = scmp.ne.s32.totalorder %s56, %s58
      %p62 = scmp.eq.s32.totalorder %s22, 0
      %p63 = por %p61, %p62
      %p64 = scmp.ne.s32.totalorder %s56, %s58
      %p65 = scmp.eq.s32.totalorder %s27, 1
      %p66 = por %p64, %p65
      %p67 = scmp.ne.s32.totalorder %s58, %s59
      %p68 = scmp.eq.s32.totalorder %s27, 0
      %p69 = por %p67, %p68
      %p70 = scmp.ne.s32.totalorder %s58, %s59
      %p71 = scmp.eq.s32.totalorder %s28, 1
      %p72 = por %p70, %p71
      %p74 = scmp.ne.s32.totalorder %s59, %s73
      %p75 = scmp.eq.s32.totalorder %s28, 0
      %p76 = por %p74, %p75
      %s78 = sadd.s32 %s77, 1
      %p81 = scmp.eq.s32.totalorder %s22, 1
      %p82 = scmp.ne.s32.totalorder %s77, %s79
      %p83 = scmp.eq.s32.totalorder %s22, 0
      %p84 = por %p82, %p83
      %p85 = scmp.ne.s32.totalorder %s77, %s79
      %p86 = scmp.eq.s32.totalorder %s27, 1
      %p87 = por %p85, %p86
      %p88 = scmp.ne.s32.totalorder %s79, %s80
      %p89 = scmp.eq.s32.totalorder %s27, 0
      %p90 = por %p88, %p89
      %p91 = scmp.ne.s32.totalorder %s79, %s80
      %p92 = scmp.eq.s32.totalorder %s28, 1
      %p93 = por %p91, %p92
      %p95 = scmp.ne.s32.totalorder %s80, %s94
      %p96 = scmp.eq.s32.totalorder %s28, 0
      %p97 = por %p95, %p96
      %s99 = sadd.s32 %s98, 1
      %p102 = scmp.eq.s32.totalorder %s22, 1
      %p103 = scmp.ne.s32.totalorder %s98, %s100
      %p104 = scmp.eq.s32.totalorder %s22, 0
      %p105 = por %p103, %p104
      %p106 = scmp.ne.s32.totalorder %s98, %s100
      %p107 = scmp.eq.s32.totalorder %s27, 1
      %p108 = por %p106, %p107
      %p109 = scmp.ne.s32.totalorder %s100, %s101
      %p110 = scmp.eq.s32.totalorder %s27, 0
      %p111 = por %p109, %p110
      %p112 = scmp.ne.s32.totalorder %s100, %s101
      %p113 = scmp.eq.s32.totalorder %s28, 1
      %p114 = por %p112, %p113
      %p116 = scmp.ne.s32.totalorder %s101, %s115
      %p117 = scmp.eq.s32.totalorder %s28, 0
      %p118 = por %p116, %p117
      %s119 = ssub.s32 %s22, %s29
      %p120 = scmp.eq.s32.totalorder %s119, 0
      %s122 = sadd.s32 %s121, 1
      %s123 = scalar_select %p120, %s121, %s122
      %p126 = pneg %p120
      %p127 = scmp.eq.s32.totalorder %s22, 1
      %p128 = por %p126, %p127
      %p129 = scmp.ne.s32.totalorder %s121, %s124
      %p130 = scmp.eq.s32.totalorder %s22, 0
      %p131 = por %p129, %p130
      %p132 = scmp.ne.s32.totalorder %s121, %s124
      %p133 = scmp.eq.s32.totalorder %s27, 1
      %p134 = por %p132, %p133
      %p135 = scmp.ne.s32.totalorder %s124, %s125
      %p136 = scmp.eq.s32.totalorder %s27, 0
      %p137 = por %p135, %p136
      %p138 = scmp.ne.s32.totalorder %s124, %s125
      %p139 = scmp.eq.s32.totalorder %s28, 1
      %p140 = por %p138, %p139
      %p142 = scmp.ne.s32.totalorder %s125, %s141
      %p143 = scmp.eq.s32.totalorder %s28, 0
      %p144 = por %p142, %p143
      %s145 = ssub.s32 %s22, %s29
      %p146 = scmp.eq.s32.totalorder %s145, 0
      %s148 = sadd.s32 %s147, 1
      %s149 = scalar_select %p146, %s147, %s148
      %p152 = pneg %p146
      %p153 = scmp.eq.s32.totalorder %s22, 1
      %p154 = por %p152, %p153
      %p155 = scmp.ne.s32.totalorder %s147, %s150
      %p156 = scmp.eq.s32.totalorder %s22, 0
      %p157 = por %p155, %p156
      %p158 = scmp.ne.s32.totalorder %s147, %s150
      %p159 = scmp.eq.s32.totalorder %s27, 1
      %p160 = por %p158, %p159
      %p161 = scmp.ne.s32.totalorder %s150, %s151
      %p162 = scmp.eq.s32.totalorder %s27, 0
      %p163 = por %p161, %p162
      %p164 = scmp.ne.s32.totalorder %s150, %s151
      %p165 = scmp.eq.s32.totalorder %s28, 1
      %p166 = por %p164, %p165
      %p168 = scmp.ne.s32.totalorder %s151, %s167
      %p169 = scmp.eq.s32.totalorder %s28, 0
      %p170 = por %p168, %p169
      %p171 = scmp.le.s32.totalorder 1, %s22
      %p172 = scmp.lt.s32.totalorder %s22, 3
      %p173 = pnand %p171, %p172
      %p174 = pneg %p173
      // Predicated region
      $region9: #{tpu_custom_call.1} parent=5 // pred_check
        _
      $region10: #{tpu_custom_call.1} parent=5 // pred_check_branch
        %176 = sbr.rel (%p173) target = $region12
      $region11: #{tpu_custom_call.1} parent=5 // pred_region
        %s177 = ssub.s32 %s22, 1
        // Predicated region
        $region13: #{tpu_custom_call.1} parent=11 // pred_check
          %p178 = pneg %p69
        $region14: #{tpu_custom_call.1} parent=11 // pred_check_branch
          %180 = sbr.rel (%p178) target = $region16
        $region15: #{tpu_custom_call.1} parent=11 // pred_region
          %s182 = ssub.s32 256, 256
          %183 = vsyncadd [#allocation6], %s182
          %s184 = sshll.u32 [#allocation5], 4
          %s185 = int_to_ptr.vmem [resolvable:$true] %s184
          %190 = dma.hbm_to_vmem [thread:$0]  %s1, 256, %s185, [#allocation6], 64, 64, 4
        $region16: #{tpu_custom_call.1} parent=11 // pred_fallthru
          _
        // Predicated region
        $region17: #{tpu_custom_call.1} parent=11 // pred_check
          %p191 = pneg %p90
        $region18: #{tpu_custom_call.1} parent=11 // pred_check_branch
          %193 = sbr.rel (%p191) target = $region20
        $region19: #{tpu_custom_call.1} parent=11 // pred_region
          _
        $region20: #{tpu_custom_call.1} parent=11 // pred_fallthru
          _
        // Predicated region
        $region21: #{tpu_custom_call.1} parent=11 // pred_check
          %p194 = pneg %p111
        $region22: #{tpu_custom_call.1} parent=11 // pred_check_branch
          %196 = sbr.rel (%p194) target = $region24
        $region23: #{tpu_custom_call.1} parent=11 // pred_region
          _
        $region24: #{tpu_custom_call.1} parent=11 // pred_fallthru
          _
      $region12: #{tpu_custom_call.1} parent=5 // pred_fallthru
        _
      %p197 = scmp.lt.s32.totalorder %s22, 2
      // Predicated region
      $region25: #{tpu_custom_call.1} parent=5 // pred_check
        %p198 = pneg %p197
      $region26: #{tpu_custom_call.1} parent=5 // pred_check_branch
        %200 = sbr.rel (%p198) target = $region28
      $region27: #{tpu_custom_call.1} parent=5 // pred_region
        // Predicated region
        $region29: #{tpu_custom_call.1} parent=27 // pred_check
          %p201 = pneg %p42
        $region30: #{tpu_custom_call.1} parent=27 // pred_check_branch
          %203 = sbr.rel (%p201) target = $region32
        $region31: #{tpu_custom_call.1} parent=27 // pred_region
          %s204 = sand.u32 %s32, 1
          %s205 = scalar_lea.sflag [#allocation3], %s204
          %s206 = sand.u32 %s32, 1
          %s207 = smul.addr %s206, 4
          %s208 = scalar_lea.vmem [#allocation2], %s207
          %s210 = ssub.s32 64, 64
          %211 = vsyncadd %s205, %s210
          %s212 = smul.addr %s22, 64
          %s213 = scalar_lea.hbm %s0, %s212
          %s215 = sshll.u32 %s208, 4
          %s216 = int_to_ptr.vmem [resolvable:$true] %s215
          %218 = dma.hbm_to_vmem [thread:$0]  %s213, 64, %s216, %s205
        $region32: #{tpu_custom_call.1} parent=27 // pred_fallthru
          _
      $region28: #{tpu_custom_call.1} parent=5 // pred_fallthru
        _
      %p219 = scmp.le.s32.totalorder 1, %s22
      %p220 = scmp.lt.s32.totalorder %s22, 3
      %p221 = pnand %p219, %p220
      %p222 = pneg %p221
      // Predicated region
      $region33: #{tpu_custom_call.1} parent=5 // pred_check
        _
      $region34: #{tpu_custom_call.1} parent=5 // pred_check_branch
        %224 = sbr.rel (%p221) target = $region36
      $region35: #{tpu_custom_call.1} parent=5 // pred_region
        %s225 = ssub.s32 %s22, 1
        %s226 = sand.u32 %s35, 1
        %s227 = scalar_lea.sflag [#allocation3], %s226
        %s228 = sand.u32 %s35, 1
        %s229 = smul.addr %s228, 4
        %s230 = scalar_lea.vmem [#allocation2], %s229
        // Predicated region
        $region37: #{tpu_custom_call.1} parent=35 // pred_check
          %p231 = pneg %p48
        $region38: #{tpu_custom_call.1} parent=35 // pred_check_branch
          %233 = sbr.rel (%p231) target = $region40
        $region39: #{tpu_custom_call.1} parent=35 // pred_region
          %234 = dma.done %s227, 64
        $region40: #{tpu_custom_call.1} parent=35 // pred_fallthru
          _
        // Predicated region
        $region41: #{tpu_custom_call.1} parent=35 // pred_check
          %p235 = pneg %p69
        $region42: #{tpu_custom_call.1} parent=35 // pred_check_branch
          %237 = sbr.rel (%p235) target = $region44
        $region43: #{tpu_custom_call.1} parent=35 // pred_region
          %238 = dma.done [#allocation6], 256
        $region44: #{tpu_custom_call.1} parent=35 // pred_fallthru
          _
        %s239 = sand.u32 %s35, 1
        %s240 = scalar_lea.sflag [#allocation3], %s239
        %s241 = sand.u32 %s35, 1
        %s242 = smul.addr %s241, 4
        %s243 = scalar_lea.vmem [#allocation2], %s242
        %p244 = pneg %p48
        %p245 = pneg %p45
        %p246 = pneg %p69
        %p247 = pneg %p66
        %p248 = pneg %p90
        %p249 = pneg %p87
        %p250 = pneg %p111
        %p251 = pneg %p108
        %p252 = pneg %p137
        %p253 = pneg %p134
        %s254 = sand.u32 %s124, 1
        %s255 = scalar_lea.sflag [#allocation4], %s254
        %s256 = sand.u32 %s124, 1
        %s257 = smul.addr %s256, 16
        %s258 = scalar_lea.vmem [#allocation7], %s257
        %p259 = pneg %p163
        %p260 = pneg %p160
        %s261 = sand.u32 %s150, 1
        %s262 = scalar_lea.sflag [#allocation9], %s261
        %s263 = sand.u32 %s150, 1
        %s264 = smul.addr %s263, 16
        %s265 = scalar_lea.vmem [#allocation8], %s264
        %v267 = vld [vmem:[%s230] sm:$0xf]
        %v268 = vld [vmem:[#allocation5] sm:$0xf]
        %v269 = vld [vmem:[#allocation5 + $0x4] sm:$0xf]
        %v270 = vld [vmem:[#allocation5 + $0x8] sm:$0xf]
        %v271 = vld [vmem:[#allocation5 + $0xc] sm:$0xf]
        %v272 = vld [vmem:[%s2] sm:$0x1]
        %v274 = vlaneseq
        %v275 = vshrl.u32 %v274, 7
        %v276 = vsub.s32 0, %v275
        %v277 = vrot.slane %v272, %v276
        %v283 = vunpack.c.l.b16 %v268
        %v284 = vunpack.c.l.b16 %v269
        %v285 = vunpack.c.l.b16 %v270
        %v286 = vunpack.c.l.b16 %v271
        %v287 = vpack.c.b16 %v284, %v283
        %v288 = vpack.c.b16 %v286, %v285
        %vm291 = vcmask 261120
        %v293 = vsel %vm291, %v267, 0
        %295 = vmatprep.subr.bf16.mxu0 0
        %296 = vmatpush1.bf16.msra.mxu0 0
        %297 = vmatprep.subr.bf16.mxu0 0
        %298 = vmatpush1.bf16.msra.mxu0 0
        %299 = vmatprep.subr.bf16.mxu0 0
        %300 = vmatpush1.bf16.msra.mxu0 0
        %301 = vmatprep.subr.bf16.mxu0 0
        %302 = vmatpush1.bf16.msra.mxu0 0
        %303 = vmatprep.subr.bf16.mxu0 0
        %304 = vmatpush1.bf16.msra.mxu0 0
        %305 = vmatprep.subr.bf16.mxu0 0
        %306 = vmatpush1.bf16.msra.mxu0 0
        %307 = vmatprep.subr.bf16.mxu0 0
        %308 = vmatpush1.bf16.msra.mxu0 %v288
        %309 = vmatprep.subr.bf16.mxu0 0
        %310 = vmatpush1.bf16.msra.mxu0 %v287
        %311 = vmatprep.subr.bf16.mxu0 0
        %312 = vmatpush2.bf16.msra.mxu0 0
        %313 = vmatprep.subr.bf16.mxu0 0
        %314 = vmatpush2.bf16.msra.mxu0 0
        %315 = vmatprep.subr.bf16.mxu0 0
        %316 = vmatpush2.bf16.msra.mxu0 0
        %317 = vmatprep.subr.bf16.mxu0 0
        %318 = vmatpush2.bf16.msra.mxu0 0
        %319 = vmatprep.subr.bf16.mxu0 0
        %320 = vmatpush2.bf16.msra.mxu0 0
        %321 = vmatprep.subr.bf16.mxu0 0
        %322 = vmatpush2.bf16.msra.mxu0 0
        %323 = vmatprep.subr.bf16.mxu0 0
        %324 = vmatpush2.bf16.msra.mxu0 0
        %325 = vmatprep.subr.bf16.mxu0 0
        %326 = vmatpush2.bf16.msra.mxu0 0
        %327 = vmatprep.mubr.bf16.mxu0 0
        %328 = vmatmul.mubr.bf16.gmra.mxu0 %v293
        %v329 = vpop.f32.mrf.mxu0
        %v330 = vadd.f32 %v277, %v329
        %v331 = vpop.f32.mrf.mxu0
        %v332 = vpop.f32.mrf.mxu0
        %v333 = vpop.f32.mrf.mxu0
        %334 = vdwg.mxu0
        %v335 = vld [vmem:[%s3] sm:$0x1]
        %v336 = vsel %vm291, %v330, 0.0
        %337 = vadd.xlane.f32.xlu0 %v336
        %v338 = vpop.xlane.xlu0 %337
        %v339 = vrcp.pop 32.0
        %v340 = vmul.f32 %v338, %v339
        %v341 = vsub.f32 %v330, %v340
        %v342 = vmul.f32 %v341, %v341
        %v343 = vsel %vm291, %v342, 0.0
        %344 = vadd.xlane.f32.xlu0 %v343
        %v345 = vpop.xlane.xlu0 %344
        %v346 = vmul.f32 %v345, %v339
        %v347 = vadd.f32 %v346, 1e-06
        %v348 = vrsqrt.pop %v347
        %v349 = vmul.f32 %v341, %v348
        %v351 = vlaneseq
        %v352 = vshrl.u32 %v351, 7
        %v353 = vsub.s32 0, %v352
        %v354 = vrot.slane %v335, %v353
        %v356 = vmul.f32 %v349, %v354
        %v357 = vpack.c.bf16 %v356, %v356
        %v358 = vpack.c.bf16 %v330, %v330
        %vm359 = vcmask 60416
        %360 = vst.msk [vmem:[%s258] sm:$0xf] %vm359, %v357
        %v362 = vunpack.c.l.b16 %v358
        %v363 = vpack.c.b16 %v362, %v362
        %364 = vrot.lane.b32.xlu0 %v363, 96
        %v365 = vpop.permute.xlu0 %364
        %367 = vst.msk [vmem:[%s265] sm:$0xf] %vm359, %v365
        %v369 = vunpack.c.l.b16 %v357
        %v370 = vpack.c.b16 %v369, %v369
        %371 = vrot.lane.b32.xlu0 %v370, 120
        %v372 = vpop.permute.xlu0 %371
        %s374 = scalar_lea.vmem %s258, 4 [#allocation7]
        %375 = vst.msk [vmem:[%s374] sm:$0xf] %vm359, %v372
        %376 = vrot.lane.b32.xlu0 %v363, 88
        %v377 = vpop.permute.xlu0 %376
        %s379 = scalar_lea.vmem %s265, 4 [#allocation8]
        %380 = vst.msk [vmem:[%s379] sm:$0xf] %vm359, %v377
        %381 = vrot.lane.b32.xlu0 %v370, 112
        %v382 = vpop.permute.xlu0 %381
        %s384 = scalar_lea.vmem %s258, 8 [#allocation7]
        %385 = vst.msk [vmem:[%s384] sm:$0xf] %vm359, %v382
        %386 = vrot.lane.b32.xlu0 %v363, 80
        %v387 = vpop.permute.xlu0 %386
        %s389 = scalar_lea.vmem %s265, 8 [#allocation8]
        %390 = vst.msk [vmem:[%s389] sm:$0xf] %vm359, %v387
        %391 = vrot.lane.b32.xlu0 %v370, 104
        %v392 = vpop.permute.xlu0 %391
        %s394 = scalar_lea.vmem %s258, 12 [#allocation7]
        %395 = vst.msk [vmem:[%s394] sm:$0xf] %vm359, %v392
        %396 = vrot.lane.b32.xlu0 %v363, 72
        %v397 = vpop.permute.xlu0 %396
        %s399 = scalar_lea.vmem %s265, 12 [#allocation8]
        %400 = vst.msk [vmem:[%s399] sm:$0xf] %vm359, %v397
        %s401 = sand.u32 %s124, 1
        %s402 = scalar_lea.sflag [#allocation4], %s401
        %s403 = sand.u32 %s124, 1
        %s404 = smul.addr %s403, 16
        %s405 = scalar_lea.vmem [#allocation7], %s404
        %s406 = sand.u32 %s150, 1
        %s407 = scalar_lea.sflag [#allocation9], %s406
        %s408 = sand.u32 %s150, 1
        %s409 = smul.addr %s408, 16
        %s410 = scalar_lea.vmem [#allocation8], %s409
        // Predicated region
        $region45: #{tpu_custom_call.1} parent=35 // pred_check
          %p411 = pneg %p134
        $region46: #{tpu_custom_call.1} parent=35 // pred_check_branch
          %413 = sbr.rel (%p411) target = $region48
        $region47: #{tpu_custom_call.1} parent=35 // pred_region
          %s415 = ssub.s32 256, 256
          %416 = vsyncadd %s402, %s415
          %s417 = smul.addr %s27, 4
          %s418 = smul.addr %s417, 64
          %s419 = scalar_lea.hbm %s4, %s418
          %s420 = sshll.u32 %s405, 4
          %s421 = int_to_ptr.vmem [resolvable:$true] %s420
          %426 = dma.vmem_to_hbm [thread:$0]  %s421, 256, %s419, %s402, 64, 64, 4
        $region48: #{tpu_custom_call.1} parent=35 // pred_fallthru
          _
        // Predicated region
        $region49: #{tpu_custom_call.1} parent=35 // pred_check
          %p427 = pneg %p160
        $region50: #{tpu_custom_call.1} parent=35 // pred_check_branch
          %429 = sbr.rel (%p427) target = $region52
        $region51: #{tpu_custom_call.1} parent=35 // pred_region
          %s431 = ssub.s32 256, 256
          %432 = vsyncadd %s407, %s431
          %s433 = smul.addr %s27, 4
          %s434 = smul.addr %s433, 64
          %s435 = scalar_lea.hbm %s5, %s434
          %s436 = sshll.u32 %s410, 4
          %s437 = int_to_ptr.vmem [resolvable:$true] %s436
          %442 = dma.vmem_to_hbm [thread:$0]  %s437, 256, %s435, %s407, 64, 64, 4
        $region52: #{tpu_custom_call.1} parent=35 // pred_fallthru
          _
      $region36: #{tpu_custom_call.1} parent=5 // pred_fallthru
        _
      %p443 = scmp.le.s32.totalorder 2, %s22
      // Predicated region
      $region53: #{tpu_custom_call.1} parent=5 // pred_check
        %p444 = pneg %p443
      $region54: #{tpu_custom_call.1} parent=5 // pred_check_branch
        %446 = sbr.rel (%p444) target = $region56
      $region55: #{tpu_custom_call.1} parent=5 // pred_region
        %s447 = ssub.s32 %s22, 2
        // Predicated region
        $region57: #{tpu_custom_call.1} parent=55 // pred_check
          %p448 = pneg %p140
        $region58: #{tpu_custom_call.1} parent=55 // pred_check_branch
          %450 = sbr.rel (%p448) target = $region60
        $region59: #{tpu_custom_call.1} parent=55 // pred_region
          %s451 = sand.u32 %s125, 1
          %s452 = scalar_lea.sflag [#allocation4], %s451
          %s453 = sand.u32 %s125, 1
          %s454 = smul.addr %s453, 16
          %s455 = scalar_lea.vmem [#allocation7], %s454
          %456 = dma.done %s452, 256
        $region60: #{tpu_custom_call.1} parent=55 // pred_fallthru
          _
        // Predicated region
        $region61: #{tpu_custom_call.1} parent=55 // pred_check
          %p457 = pneg %p166
        $region62: #{tpu_custom_call.1} parent=55 // pred_check_branch
          %459 = sbr.rel (%p457) target = $region64
        $region63: #{tpu_custom_call.1} parent=55 // pred_region
          %s460 = sand.u32 %s151, 1
          %s461 = scalar_lea.sflag [#allocation9], %s460
          %s462 = sand.u32 %s151, 1
          %s463 = smul.addr %s462, 16
          %s464 = scalar_lea.vmem [#allocation8], %s463
          %465 = dma.done %s461, 256
        $region64: #{tpu_custom_call.1} parent=55 // pred_fallthru
          _
      $region56: #{tpu_custom_call.1} parent=5 // pred_fallthru
        _
    $region6: #{tpu_custom_call.1} parent=1 // loop_footer
      %s26 = sadd.s32 1, %s22
    $region7: #{tpu_custom_call.1} parent=1 // loop_footer_branch
      %21 = sbr.rel target = $region3
    $region8: #{tpu_custom_call.1} parent=1 // loop_exit
      _
    %466 = vsyncpa [#allocation3], 1
    %s467 = scalar_lea.sflag [#allocation3], 1
    %468 = vsyncpa %s467, 1
    %469 = vsyncpa [#allocation6], 1
    %470 = vsyncpa [#allocation4], 1
    %s471 = scalar_lea.sflag [#allocation4], 1
    %472 = vsyncpa %s471, 1
    %473 = vsyncpa [#allocation9], 1
    %s474 = scalar_lea.sflag [#allocation9], 1
    %475 = vsyncpa %s474, 1

// kernel: tpu_custom_call.1
$region0: #{tpu_custom_call.1}
  #allocation0 [shape = 'u32[]', space=smem, size = 0x4, offset = 0x4, fixed_abs, tag = 'smem constant byte address 0x4 - core index']
  #allocation1 [shape = 'u32[144,128]{1,0:T(1,128)}', space=vmem, size = 0x12000, scoped, tag = 'internal scratch']
  %s0 = inlined_call_operand.hbm [shape: bf16[2,8,32], index: 0, kind: input, shape index: {}]
  %s1 = inlined_call_operand.hbm [shape: bf16[32,64], index: 1, kind: input, shape index: {}]
  %s2 = inlined_call_operand.vmem [shape: f32[1,64], index: 2, kind: input, shape index: {}]
  %s3 = inlined_call_operand.vmem [shape: f32[1,32], index: 3, kind: input, shape index: {}]
  %s4 = inlined_call_operand.hbm [shape: bf16[2,4,8,8], index: 4, kind: output, shape index: {0}]
  %s5 = inlined_call_operand.hbm [shape: bf16[2,4,8,8], index: 5, kind: output, shape index: {1}]
  %6 = xla_tuple %s4, %s5
  %s7 = sld [smem:[#allocation0]]
  $region65: #{tpu_custom_call.1} parent=0
    _
  %s9 = ssub.s32 1, %s7
  %s10 = scalar_select 0, %s9, %s7
  $region1: #{tpu_custom_call.1} parent=0
    #allocation2 [shape = 'u8[4096]{0}', space=vmem, size = 0x1000, scoped, tag = 'input window, operand 0']
    #allocation3 [shape = 's32[2]{0}', space=sflag, size = 0x8, scoped, tag = 'scoped memory for tpu_custom_call.1']
    #allocation4 [shape = 's32[2]{0}', space=sflag, size = 0x8, scoped, tag = 'scoped memory for tpu_custom_call.1']
    #allocation5 [shape = 'u8[8192]{0}', space=vmem, size = 0x2000, scoped, tag = 'input window, operand 1, single buffered']
    #allocation6 [shape = 's32[1]{0}', space=sflag, size = 0x4, scoped, tag = 'scoped memory for tpu_custom_call.1']
    #allocation7 [shape = 'u8[16384]{0}', space=vmem, size = 0x4000, scoped, tag = 'output window, operand 0']
    #allocation8 [shape = 'u8[16384]{0}', space=vmem, size = 0x4000, scoped, tag = 'output window, operand 1']
    #allocation9 [shape = 's32[2]{0}', space=sflag, size = 0x8, scoped, tag = 'scoped memory for tpu_custom_call.1']
    %11 = vsyncpa [#allocation3], 0
    %s12 = scalar_lea.sflag [#allocation3], 1
    %13 = vsyncpa %s12, 0
    %14 = vsyncpa [#allocation6], 0
    %15 = vsyncpa [#allocation4], 0
    %s16 = scalar_lea.sflag [#allocation4], 1
    %17 = vsyncpa %s16, 0
    %18 = vsyncpa [#allocation9], 0
    %s19 = scalar_lea.sflag [#allocation9], 1
    %20 = vsyncpa %s19, 0
    loop: start=0, step=1, limit=4
    $region2: #{tpu_custom_call.1} parent=1 // loop_pre_header
      _
    $region3: #{tpu_custom_call.1} parent=1 // loop_header
      %s22 = sphi 0, %s26
      %p23 = scmp.ge.s32.totalorder %s22, 4
      %s32 = sphi 0, %s34
      %s35 = sphi 0, %s32
      %s36 = sphi 0, %s35
      %s52 = sphi 0, %s36
      %s56 = sphi 0, %s56
      %s58 = sphi 0, %s56
      %s59 = sphi 0, %s58
      %s73 = sphi 0, %s59
      %s77 = sphi 0, %s77
      %s79 = sphi 0, %s77
      %s80 = sphi 0, %s79
      %s94 = sphi 0, %s80
      %s98 = sphi 0, %s98
      %s100 = sphi 0, %s98
      %s101 = sphi 0, %s100
      %s115 = sphi 0, %s101
      %s121 = sphi 0, %s123
      %s124 = sphi 0, %s121
      %s125 = sphi 0, %s124
      %s141 = sphi 0, %s125
      %s147 = sphi 0, %s149
      %s150 = sphi 0, %s147
      %s151 = sphi 0, %s150
      %s167 = sphi 0, %s151
    $region4: #{tpu_custom_call.1} parent=1 // loop_header_branch
      %25 = sbr.rel (%p23) target = $region8
    $region5: #{tpu_custom_call.1} parent=1 // loop_body
      %s27 = ssub.s32 %s22, 1
      %s28 = ssub.s32 %s22, 2
      %s29 = sadd.s32 %s22, 1
      %s30 = ssub.s32 %s22, %s29
      %p31 = scmp.eq.s32.totalorder %s30, 0
      %s33 = sadd.s32 %s32, 1
      %s34 = scalar_select %p31, %s32, %s33
      %p37 = pneg %p31
      %p38 = scmp.eq.s32.totalorder %s22, 1
      %p39 = por %p37, %p38
      %p40 = scmp.ne.s32.totalorder %s32, %s35
      %p41 = scmp.eq.s32.totalorder %s22, 0
      %p42 = por %p40, %p41
      %p43 = scmp.ne.s32.totalorder %s32, %s35
      %p44 = scmp.eq.s32.totalorder %s27, 1
      %p45 = por %p43, %p44
      %p46 = scmp.ne.s32.totalorder %s35, %s36
      %p47 = scmp.eq.s32.totalorder %s27, 0
      %p48 = por %p46, %p47
      %p49 = scmp.ne.s32.totalorder %s35, %s36
      %p50 = scmp.eq.s32.totalorder %s28, 1
      %p51 = por %p49, %p50
      %p53 = scmp.ne.s32.totalorder %s36, %s52
      %p54 = scmp.eq.s32.totalorder %s28, 0
      %p55 = por %p53, %p54
      %s57 = sadd.s32 %s56, 1
      %p60 = scmp.eq.s32.totalorder %s22, 1
      %p61 = scmp.ne.s32.totalorder %s56, %s58
      %p62 = scmp.eq.s32.totalorder %s22, 0
      %p63 = por %p61, %p62
      %p64 = scmp.ne.s32.totalorder %s56, %s58
      %p65 = scmp.eq.s32.totalorder %s27, 1
      %p66 = por %p64, %p65
      %p67 = scmp.ne.s32.totalorder %s58, %s59
      %p68 = scmp.eq.s32.totalorder %s27, 0
      %p69 = por %p67, %p68
      %p70 = scmp.ne.s32.totalorder %s58, %s59
      %p71 = scmp.eq.s32.totalorder %s28, 1
      %p72 = por %p70, %p71
      %p74 = scmp.ne.s32.totalorder %s59, %s73
      %p75 = scmp.eq.s32.totalorder %s28, 0
      %p76 = por %p74, %p75
      %s78 = sadd.s32 %s77, 1
      %p81 = scmp.eq.s32.totalorder %s22, 1
      %p82 = scmp.ne.s32.totalorder %s77, %s79
      %p83 = scmp.eq.s32.totalorder %s22, 0
      %p84 = por %p82, %p83
      %p85 = scmp.ne.s32.totalorder %s77, %s79
      %p86 = scmp.eq.s32.totalorder %s27, 1
      %p87 = por %p85, %p86
      %p88 = scmp.ne.s32.totalorder %s79, %s80
      %p89 = scmp.eq.s32.totalorder %s27, 0
      %p90 = por %p88, %p89
      %p91 = scmp.ne.s32.totalorder %s79, %s80
      %p92 = scmp.eq.s32.totalorder %s28, 1
      %p93 = por %p91, %p92
      %p95 = scmp.ne.s32.totalorder %s80, %s94
      %p96 = scmp.eq.s32.totalorder %s28, 0
      %p97 = por %p95, %p96
      %s99 = sadd.s32 %s98, 1
      %p102 = scmp.eq.s32.totalorder %s22, 1
      %p103 = scmp.ne.s32.totalorder %s98, %s100
      %p104 = scmp.eq.s32.totalorder %s22, 0
      %p105 = por %p103, %p104
      %p106 = scmp.ne.s32.totalorder %s98, %s100
      %p107 = scmp.eq.s32.totalorder %s27, 1
      %p108 = por %p106, %p107
      %p109 = scmp.ne.s32.totalorder %s100, %s101
      %p110 = scmp.eq.s32.totalorder %s27, 0
      %p111 = por %p109, %p110
      %p112 = scmp.ne.s32.totalorder %s100, %s101
      %p113 = scmp.eq.s32.totalorder %s28, 1
      %p114 = por %p112, %p113
      %p116 = scmp.ne.s32.totalorder %s101, %s115
      %p117 = scmp.eq.s32.totalorder %s28, 0
      %p118 = por %p116, %p117
      %s119 = ssub.s32 %s22, %s29
      %p120 = scmp.eq.s32.totalorder %s119, 0
      %s122 = sadd.s32 %s121, 1
      %s123 = scalar_select %p120, %s121, %s122
      %p126 = pneg %p120
      %p127 = scmp.eq.s32.totalorder %s22, 1
      %p128 = por %p126, %p127
      %p129 = scmp.ne.s32.totalorder %s121, %s124
      %p130 = scmp.eq.s32.totalorder %s22, 0
      %p131 = por %p129, %p130
      %p132 = scmp.ne.s32.totalorder %s121, %s124
      %p133 = scmp.eq.s32.totalorder %s27, 1
      %p134 = por %p132, %p133
      %p135 = scmp.ne.s32.totalorder %s124, %s125
      %p136 = scmp.eq.s32.totalorder %s27, 0
      %p137 = por %p135, %p136
      %p138 = scmp.ne.s32.totalorder %s124, %s125
      %p139 = scmp.eq.s32.totalorder %s28, 1
      %p140 = por %p138, %p139
      %p142 = scmp.ne.s32.totalorder %s125, %s141
      %p143 = scmp.eq.s32.totalorder %s28, 0
      %p144 = por %p142, %p143
      %s145 = ssub.s32 %s22, %s29
      %p146 = scmp.eq.s32.totalorder %s145, 0
      %s148 = sadd.s32 %s147, 1
      %s149 = scalar_select %p146, %s147, %s148
      %p152 = pneg %p146
      %p153 = scmp.eq.s32.totalorder %s22, 1
      %p154 = por %p152, %p153
      %p155 = scmp.ne.s32.totalorder %s147, %s150
      %p156 = scmp.eq.s32.totalorder %s22, 0
      %p157 = por %p155, %p156
      %p158 = scmp.ne.s32.totalorder %s147, %s150
      %p159 = scmp.eq.s32.totalorder %s27, 1
      %p160 = por %p158, %p159
      %p161 = scmp.ne.s32.totalorder %s150, %s151
      %p162 = scmp.eq.s32.totalorder %s27, 0
      %p163 = por %p161, %p162
      %p164 = scmp.ne.s32.totalorder %s150, %s151
      %p165 = scmp.eq.s32.totalorder %s28, 1
      %p166 = por %p164, %p165
      %p168 = scmp.ne.s32.totalorder %s151, %s167
      %p169 = scmp.eq.s32.totalorder %s28, 0
      %p170 = por %p168, %p169
      %p171 = scmp.le.s32.totalorder 1, %s22
      %p172 = scmp.lt.s32.totalorder %s22, 3
      %p173 = pnand %p171, %p172
      %p174 = pneg %p173
      // Predicated region
      $region9: #{tpu_custom_call.1} parent=5 // pred_check
        _
      $region10: #{tpu_custom_call.1} parent=5 // pred_check_branch
        %176 = sbr.rel (%p173) target = $region12
      $region11: #{tpu_custom_call.1} parent=5 // pred_region
        %s177 = ssub.s32 %s22, 1
        // Predicated region
        $region13: #{tpu_custom_call.1} parent=11 // pred_check
          %p178 = pneg %p69
        $region14: #{tpu_custom_call.1} parent=11 // pred_check_branch
          %180 = sbr.rel (%p178) target = $region16
        $region15: #{tpu_custom_call.1} parent=11 // pred_region
          %s182 = ssub.s32 256, 256
          %183 = vsyncadd [#allocation6], %s182
          %s184 = sshll.u32 [#allocation5], 4
          %s185 = int_to_ptr.vmem [resolvable:$true] %s184
          %190 = dma.hbm_to_vmem [thread:$0]  %s1, 256, %s185, [#allocation6], 64, 64, 4
        $region16: #{tpu_custom_call.1} parent=11 // pred_fallthru
          _
        // Predicated region
        $region17: #{tpu_custom_call.1} parent=11 // pred_check
          %p191 = pneg %p90
        $region18: #{tpu_custom_call.1} parent=11 // pred_check_branch
          %193 = sbr.rel (%p191) target = $region20
        $region19: #{tpu_custom_call.1} parent=11 // pred_region
          _
        $region20: #{tpu_custom_call.1} parent=11 // pred_fallthru
          _
        // Predicated region
        $region21: #{tpu_custom_call.1} parent=11 // pred_check
          %p194 = pneg %p111
        $region22: #{tpu_custom_call.1} parent=11 // pred_check_branch
          %196 = sbr.rel (%p194) target = $region24
        $region23: #{tpu_custom_call.1} parent=11 // pred_region
          _
        $region24: #{tpu_custom_call.1} parent=11 // pred_fallthru
          _
      $region12: #{tpu_custom_call.1} parent=5 // pred_fallthru
        _
      %p197 = scmp.lt.s32.totalorder %s22, 2
      // Predicated region
      $region25: #{tpu_custom_call.1} parent=5 // pred_check
        %p198 = pneg %p197
      $region26: #{tpu_custom_call.1} parent=5 // pred_check_branch
        %200 = sbr.rel (%p198) target = $region28
      $region27: #{tpu_custom_call.1} parent=5 // pred_region
        // Predicated region
        $region29: #{tpu_custom_call.1} parent=27 // pred_check
          %p201 = pneg %p42
        $region30: #{tpu_custom_call.1} parent=27 // pred_check_branch
          %203 = sbr.rel (%p201) target = $region32
        $region31: #{tpu_custom_call.1} parent=27 // pred_region
          %s204 = sand.u32 %s32, 1
          %s205 = scalar_lea.sflag [#allocation3], %s204
          %s206 = sand.u32 %s32, 1
          %s207 = smul.addr %s206, 4
          %s208 = scalar_lea.vmem [#allocation2], %s207
          %s210 = ssub.s32 64, 64
          %211 = vsyncadd %s205, %s210
          %s212 = smul.addr %s22, 64
          %s213 = scalar_lea.hbm %s0, %s212
          %s215 = sshll.u32 %s208, 4
          %s216 = int_to_ptr.vmem [resolvable:$true] %s215
          %218 = dma.hbm_to_vmem [thread:$0]  %s213, 64, %s216, %s205
        $region32: #{tpu_custom_call.1} parent=27 // pred_fallthru
          _
      $region28: #{tpu_custom_call.1} parent=5 // pred_fallthru
        _
      %p219 = scmp.le.s32.totalorder 1, %s22
      %p220 = scmp.lt.s32.totalorder %s22, 3
      %p221 = pnand %p219, %p220
      %p222 = pneg %p221
      // Predicated region
      $region33: #{tpu_custom_call.1} parent=5 // pred_check
        _
      $region34: #{tpu_custom_call.1} parent=5 // pred_check_branch
        %224 = sbr.rel (%p221) target = $region36
      $region35: #{tpu_custom_call.1} parent=5 // pred_region
        %s225 = ssub.s32 %s22, 1
        %s226 = sand.u32 %s35, 1
        %s227 = scalar_lea.sflag [#allocation3], %s226
        %s228 = sand.u32 %s35, 1
        %s229 = smul.addr %s228, 4
        %s230 = scalar_lea.vmem [#allocation2], %s229
        // Predicated region
        $region37: #{tpu_custom_call.1} parent=35 // pred_check
          %p231 = pneg %p48
        $region38: #{tpu_custom_call.1} parent=35 // pred_check_branch
          %233 = sbr.rel (%p231) target = $region40
        $region39: #{tpu_custom_call.1} parent=35 // pred_region
          %234 = dma.done %s227, 64
        $region40: #{tpu_custom_call.1} parent=35 // pred_fallthru
          _
        // Predicated region
        $region41: #{tpu_custom_call.1} parent=35 // pred_check
          %p235 = pneg %p69
        $region42: #{tpu_custom_call.1} parent=35 // pred_check_branch
          %237 = sbr.rel (%p235) target = $region44
        $region43: #{tpu_custom_call.1} parent=35 // pred_region
          %238 = dma.done [#allocation6], 256
        $region44: #{tpu_custom_call.1} parent=35 // pred_fallthru
          _
        %s239 = sand.u32 %s35, 1
        %s240 = scalar_lea.sflag [#allocation3], %s239
        %s241 = sand.u32 %s35, 1
        %s242 = smul.addr %s241, 4
        %s243 = scalar_lea.vmem [#allocation2], %s242
        %p244 = pneg %p48
        %p245 = pneg %p45
        %p246 = pneg %p69
        %p247 = pneg %p66
        %p248 = pneg %p90
        %p249 = pneg %p87
        %p250 = pneg %p111
        %p251 = pneg %p108
        %p252 = pneg %p137
        %p253 = pneg %p134
        %s254 = sand.u32 %s124, 1
        %s255 = scalar_lea.sflag [#allocation4], %s254
        %s256 = sand.u32 %s124, 1
        %s257 = smul.addr %s256, 16
        %s258 = scalar_lea.vmem [#allocation7], %s257
        %p259 = pneg %p163
        %p260 = pneg %p160
        %s261 = sand.u32 %s150, 1
        %s262 = scalar_lea.sflag [#allocation9], %s261
        %s263 = sand.u32 %s150, 1
        %s264 = smul.addr %s263, 16
        %s265 = scalar_lea.vmem [#allocation8], %s264
        %v267 = vld [vmem:[%s230] sm:$0xf]
        %v268 = vld [vmem:[#allocation5] sm:$0xf]
        %v269 = vld [vmem:[#allocation5 + $0x4] sm:$0xf]
        %v270 = vld [vmem:[#allocation5 + $0x8] sm:$0xf]
        %v271 = vld [vmem:[#allocation5 + $0xc] sm:$0xf]
        %v272 = vld [vmem:[%s2] sm:$0x1]
        %v274 = vlaneseq
        %v275 = vshrl.u32 %v274, 7
        %v276 = vsub.s32 0, %v275
        %v277 = vrot.slane %v272, %v276
        %v283 = vunpack.c.l.b16 %v268
        %v284 = vunpack.c.l.b16 %v269
        %v285 = vunpack.c.l.b16 %v270
        %v286 = vunpack.c.l.b16 %v271
        %v287 = vpack.c.b16 %v284, %v283
        %v288 = vpack.c.b16 %v286, %v285
        %vm291 = vcmask 261120
        %v293 = vsel %vm291, %v267, 0
        %295 = vmatprep.subr.bf16.mxu0 0
        %296 = vmatpush1.bf16.msra.mxu0 0
        %297 = vmatprep.subr.bf16.mxu0 0
        %298 = vmatpush1.bf16.msra.mxu0 0
        %299 = vmatprep.subr.bf16.mxu0 0
        %300 = vmatpush1.bf16.msra.mxu0 0
        %301 = vmatprep.subr.bf16.mxu0 0
        %302 = vmatpush1.bf16.msra.mxu0 0
        %303 = vmatprep.subr.bf16.mxu0 0
        %304 = vmatpush1.bf16.msra.mxu0 0
        %305 = vmatprep.subr.bf16.mxu0 0
        %306 = vmatpush1.bf16.msra.mxu0 0
        %307 = vmatprep.subr.bf16.mxu0 0
        %308 = vmatpush1.bf16.msra.mxu0 %v288
        %309 = vmatprep.subr.bf16.mxu0 0
        %310 = vmatpush1.bf16.msra.mxu0 %v287
        %311 = vmatprep.subr.bf16.mxu0 0
        %312 = vmatpush2.bf16.msra.mxu0 0
        %313 = vmatprep.subr.bf16.mxu0 0
        %314 = vmatpush2.bf16.msra.mxu0 0
        %315 = vmatprep.subr.bf16.mxu0 0
        %316 = vmatpush2.bf16.msra.mxu0 0
        %317 = vmatprep.subr.bf16.mxu0 0
        %318 = vmatpush2.bf16.msra.mxu0 0
        %319 = vmatprep.subr.bf16.mxu0 0
        %320 = vmatpush2.bf16.msra.mxu0 0
        %321 = vmatprep.subr.bf16.mxu0 0
        %322 = vmatpush2.bf16.msra.mxu0 0
        %323 = vmatprep.subr.bf16.mxu0 0
        %324 = vmatpush2.bf16.msra.mxu0 0
        %325 = vmatprep.subr.bf16.mxu0 0
        %326 = vmatpush2.bf16.msra.mxu0 0
        %327 = vmatprep.mubr.bf16.mxu0 0
        %328 = vmatmul.mubr.bf16.gmra.mxu0 %v293
        %v329 = vpop.f32.mrf.mxu0
        %v330 = vadd.f32 %v277, %v329
        %v331 = vpop.f32.mrf.mxu0
        %v332 = vpop.f32.mrf.mxu0
        %v333 = vpop.f32.mrf.mxu0
        %334 = vdwg.mxu0
        %v335 = vld [vmem:[%s3] sm:$0x1]
        %v336 = vsel %vm291, %v330, 0.0
        %337 = vadd.xlane.f32.xlu0 %v336
        %v338 = vpop.xlane.xlu0 %337
        %v339 = vrcp.pop 32.0
        %v340 = vmul.f32 %v338, %v339
        %v341 = vsub.f32 %v330, %v340
        %v342 = vmul.f32 %v341, %v341
        %v343 = vsel %vm291, %v342, 0.0
        %344 = vadd.xlane.f32.xlu0 %v343
        %v345 = vpop.xlane.xlu0 %344
        %v346 = vmul.f32 %v345, %v339
        %v347 = vadd.f32 %v346, 1e-06
        %v348 = vrsqrt.pop %v347
        %v349 = vmul.f32 %v341, %v348
        %v351 = vlaneseq
        %v352 = vshrl.u32 %v351, 7
        %v353 = vsub.s32 0, %v352
        %v354 = vrot.slane %v335, %v353
        %v356 = vmul.f32 %v349, %v354
        %v357 = vpack.c.bf16 %v356, %v356
        %v358 = vpack.c.bf16 %v330, %v330
        %vm359 = vcmask 60416
        %360 = vst.msk [vmem:[%s258] sm:$0xf] %vm359, %v357
        %v362 = vunpack.c.l.b16 %v358
        %v363 = vpack.c.b16 %v362, %v362
        %364 = vrot.lane.b32.xlu0 %v363, 96
        %v365 = vpop.permute.xlu0 %364
        %367 = vst.msk [vmem:[%s265] sm:$0xf] %vm359, %v365
        %v369 = vunpack.c.l.b16 %v357
        %v370 = vpack.c.b16 %v369, %v369
        %371 = vrot.lane.b32.xlu0 %v370, 120
        %v372 = vpop.permute.xlu0 %371
        %s374 = scalar_lea.vmem %s258, 4 [#allocation7]
        %375 = vst.msk [vmem:[%s374] sm:$0xf] %vm359, %v372
        %376 = vrot.lane.b32.xlu0 %v363, 88
        %v377 = vpop.permute.xlu0 %376
        %s379 = scalar_lea.vmem %s265, 4 [#allocation8]
        %380 = vst.msk [vmem:[%s379] sm:$0xf] %vm359, %v377
        %381 = vrot.lane.b32.xlu0 %v370, 112
        %v382 = vpop.permute.xlu0 %381
        %s384 = scalar_lea.vmem %s258, 8 [#allocation7]
        %385 = vst.msk [vmem:[%s384] sm:$0xf] %vm359, %v382
        %386 = vrot.lane.b32.xlu0 %v363, 80
        %v387 = vpop.permute.xlu0 %386
        %s389 = scalar_lea.vmem %s265, 8 [#allocation8]
        %390 = vst.msk [vmem:[%s389] sm:$0xf] %vm359, %v387
        %391 = vrot.lane.b32.xlu0 %v370, 104
        %v392 = vpop.permute.xlu0 %391
        %s394 = scalar_lea.vmem %s258, 12 [#allocation7]
        %395 = vst.msk [vmem:[%s394] sm:$0xf] %vm359, %v392
        %396 = vrot.lane.b32.xlu0 %v363, 72
        %v397 = vpop.permute.xlu0 %396
        %s399 = scalar_lea.vmem %s265, 12 [#allocation8]
        %400 = vst.msk [vmem:[%s399] sm:$0xf] %vm359, %v397
        %s401 = sand.u32 %s124, 1
        %s402 = scalar_lea.sflag [#allocation4], %s401
        %s403 = sand.u32 %s124, 1
        %s404 = smul.addr %s403, 16
        %s405 = scalar_lea.vmem [#allocation7], %s404
        %s406 = sand.u32 %s150, 1
        %s407 = scalar_lea.sflag [#allocation9], %s406
        %s408 = sand.u32 %s150, 1
        %s409 = smul.addr %s408, 16
        %s410 = scalar_lea.vmem [#allocation8], %s409
        // Predicated region
        $region45: #{tpu_custom_call.1} parent=35 // pred_check
          %p411 = pneg %p134
        $region46: #{tpu_custom_call.1} parent=35 // pred_check_branch
          %413 = sbr.rel (%p411) target = $region48
        $region47: #{tpu_custom_call.1} parent=35 // pred_region
          %s415 = ssub.s32 256, 256
          %416 = vsyncadd %s402, %s415
          %s417 = smul.addr %s27, 4
          %s418 = smul.addr %s417, 64
          %s419 = scalar_lea.hbm %s4, %s418
          %s420 = sshll.u32 %s405, 4
          %s421 = int_to_ptr.vmem [resolvable:$true] %s420
          %426 = dma.vmem_to_hbm [thread:$0]  %s421, 256, %s419, %s402, 64, 64, 4
        $region48: #{tpu_custom_call.1} parent=35 // pred_fallthru
          _
        // Predicated region
        $region49: #{tpu_custom_call.1} parent=35 // pred_check
          %p427 = pneg %p160
        $region50: #{tpu_custom_call.1} parent=35 // pred_check_branch
          %429 = sbr.rel (%p427) target = $region52
        $region51: #{tpu_custom_call.1} parent=35 // pred_region
          %s431 = ssub.s32 256, 256
          %432 = vsyncadd %s407, %s431
          %s433 = smul.addr %s27, 4
          %s434 = smul.addr %s433, 64
          %s435 = scalar_lea.hbm %s5, %s434
          %s436 = sshll.u32 %s410, 4
          %s437 = int_to_ptr.vmem [resolvable:$true] %s436
          %442 = dma.vmem_to_hbm [thread:$0]  %s437, 256, %s435, %s407, 64, 64, 4
        $region52: #{tpu_custom_call.1} parent=35 // pred_fallthru
          _
      $region36: #{tpu_custom_call.1} parent=5 // pred_fallthru
        _
      %p443 = scmp.le.s32.totalorder 2, %s22
      // Predicated region
      $region53: #{tpu_custom_call.1} parent=5 // pred_check
        %p444 = pneg %p443
      $region54: #{tpu_custom_call.1} parent=5 // pred_check_branch
        %446 = sbr.rel (%p444) target = $region56
      $region55: #{tpu_custom_call.1} parent=5 // pred_region
        %s447 = ssub.s32 %s22, 2
        // Predicated region
        $region57: #{tpu_custom_call.1} parent=55 // pred_check
          %p448 = pneg %p140
        $region58: #{tpu_custom_call.1} parent=55 // pred_check_branch
          %450 = sbr.rel (%p448) target = $region60
        $region59: #{tpu_custom_call.1} parent=55 // pred_region
          %s451 = sand.u32 %s125, 1
          %s452 = scalar_lea.sflag [#allocation4], %s451
          %s453 = sand.u32 %s125, 1
          %s454 = smul.addr %s453, 16
          %s455 = scalar_lea.vmem [#allocation7], %s454
          %456 = dma.done %s452, 256
        $region60: #{tpu_custom_call.1} parent=55 // pred_fallthru
          _
        // Predicated region
        $region61: #{tpu_custom_call.1} parent=55 // pred_check
          %p457 = pneg %p166
        $region62: #{tpu_custom_call.1} parent=55 // pred_check_branch
          %459 = sbr.rel (%p457) target = $region64
        $region63: #{tpu_custom_call.1} parent=55 // pred_region
          %s460 = sand.u32 %s151, 1
          %s461 = scalar_lea.sflag [#allocation9], %s460
          %s462 = sand.u32 %s151, 1
          %s463 = smul.addr %s462, 16
          %s464 = scalar_lea.vmem [#allocation8], %s463
          %465 = dma.done %s461, 256
        $region64: #{tpu_custom_call.1} parent=55 // pred_fallthru
          _
      $region56: #{tpu_custom_call.1} parent=5 // pred_fallthru
        _
    $region6: #{tpu_custom_call.1} parent=1 // loop_footer
      %s26 = sadd.s32 1, %s22
    $region7: #{tpu_custom_call.1} parent=1 // loop_footer_branch
      %21 = sbr.rel target = $region3
    $region8: #{tpu_custom_call.1} parent=1 // loop_exit
      _
    %466 = vsyncpa [#allocation3], 1
    %s467 = scalar_lea.sflag [#allocation3], 1
    %468 = vsyncpa %s467, 1
    %469 = vsyncpa [#allocation6], 1
    %470 = vsyncpa [#allocation4], 1
    %s471 = scalar_lea.sflag [#allocation4], 1
    %472 = vsyncpa %s471, 1
    %473 = vsyncpa [#allocation9], 1
    %s474 = scalar_lea.sflag [#allocation9], 1
    %475 = vsyncpa %s474, 1

</llo_original>
